<compile_context>
chip_gen: v6e
topology: v6e:2x2x1
jax: 0.10.0
libtpu: 0.0.40
codegen_flags: <defaults>
</compile_context>

<pallas_src>
import jax
import jax.numpy as jnp
from jax import lax
from jax.experimental import pallas as pl
from jax.experimental.pallas import tpu as pltpu


def _shift_spatial(m, s):
    """out[:, p] = m[:, p + s] if 0 <= p + s < n else 0  (static shift s)."""
    if s == 0:
        return m
    c = m.shape[0]
    zeros = jnp.zeros((c, abs(s)), m.dtype)
    if s > 0:
        return jnp.concatenate([m[:, s:], zeros], axis=1)
    return jnp.concatenate([zeros, m[:, :s]], axis=1)


def _make_res_layer_kernel(H, W, has_correction):
    HW = H * W

    def kernel(*refs):
        if has_correction:
            (x_ref, w1_ref, b1_ref, w2_ref, b2_ref, w3_ref, b3_ref,
             w4_ref, b4_ref, o_ref) = refs
        else:
            (x_ref, w1_ref, b1_ref, w2_ref, b2_ref, w3_ref, b3_ref,
             o_ref) = refs
            w4_ref = b4_ref = None

        # (Cin, H*W): channels on sublanes, spatial on the lane axis.
        x = x_ref[...].astype(jnp.float32)

        # conv1: 1x1 conv == channel matmul on the MXU, fused bias + ReLU.
        y1 = jnp.dot(w1_ref[...], x, preferred_element_type=jnp.float32)
        y1 = jnp.maximum(y1 + b1_ref[...], 0.0)          # (Cred, H*W)
        cred = y1.shape[0]

        # Horizontal-border masks (computed once, VPU).  For dx=+1 taps the
        # invalid outputs read source column 0; for dx=-1 they read column W-1.
        col = lax.broadcasted_iota(jnp.int32, (cred, HW), 1) % W
        src = {
            -1: jnp.where(col != (W - 1), y1, 0.0),   # source for dx = -1
            0: y1,
            1: jnp.where(col != 0, y1, 0.0),          # source for dx = +1
        }

        # conv2: 3x3 "same" conv as 9 shifted (Cred,Cred)@(Cred,HW) MXU matmuls.
        # Zero-fill shifting handles the vertical borders; the column masks
        # above handle the horizontal ones.
        acc = jnp.zeros((cred, HW), jnp.float32)
        for dy in (-1, 0, 1):
            for dx in (-1, 0, 1):
                t = (dy + 1) * 3 + (dx + 1)
                tap = _shift_spatial(src[dx], dy * W + dx)
                acc = acc + jnp.dot(w2_ref[t], tap,
                                    preferred_element_type=jnp.float32)
        y2 = jnp.maximum(acc + b2_ref[...], 0.0)          # (Cred, H*W)

        # Residual branch (1x1 "correction" conv + ReLU when in_f != end_f).
        if has_correction:
            res = jnp.dot(w4_ref[...], x, preferred_element_type=jnp.float32)
            res = jnp.maximum(res + b4_ref[...], 0.0)
        else:
            res = x

        # conv3: 1x1 conv + bias + residual add + final ReLU.
        y3 = jnp.dot(w3_ref[...], y2, preferred_element_type=jnp.float32)
        out = jnp.maximum(y3 + b3_ref[...] + res, 0.0)
        o_ref[...] = out.astype(o_ref.dtype)              # lane-dense (end_f, H*W)

    return kernel


def res_layer_pallas(x_nchw, params):
    """Fused ResLayer forward. x_nchw: (N, Cin, H, W), params in PyTorch OIHW layout.

    Returns (N, Cend, H, W)."""
    N, Cin, H, W = x_nchw.shape
    HW = H * W

    w1 = params["w1"][:, :, 0, 0]                                 # (red_l, Cin)
    red_l = w1.shape[0]
    w2 = jnp.transpose(params["w2"], (2, 3, 0, 1)).reshape(9, red_l, red_l)
    w3 = params["w3"][:, :, 0, 0]                                 # (end_f, red_l)
    end_f = w3.shape[0]
    b1 = params["b1"].reshape(red_l, 1)
    b2 = params["b2"].reshape(red_l, 1)
    b3 = params["b3"].reshape(end_f, 1)
    has_corr = "w4" in params

    # Channel-first: NCHW is already the right layout — just collapse spatial.
    x = x_nchw.reshape(N, Cin, HW)

    operands = [x, w1, b1, w2, b2, w3, b3]
    in_specs = [
        pl.BlockSpec((None, Cin, HW), lambda n: (n, 0, 0)),
        pl.BlockSpec((red_l, Cin), lambda n: (0, 0)),
        pl.BlockSpec((red_l, 1), lambda n: (0, 0)),
        pl.BlockSpec((9, red_l, red_l), lambda n: (0, 0, 0)),
        pl.BlockSpec((red_l, 1), lambda n: (0, 0)),
        pl.BlockSpec((end_f, red_l), lambda n: (0, 0)),
        pl.BlockSpec((end_f, 1), lambda n: (0, 0)),
    ]
    if has_corr:
        operands += [params["w4"][:, :, 0, 0], params["b4"].reshape(end_f, 1)]
        in_specs += [
            pl.BlockSpec((end_f, Cin), lambda n: (0, 0)),
            pl.BlockSpec((end_f, 1), lambda n: (0, 0)),
        ]

    out = pl.pallas_call(
        _make_res_layer_kernel(H, W, has_corr),
        out_shape=jax.ShapeDtypeStruct((N, end_f, HW), x_nchw.dtype),
        grid=(N,),
        in_specs=in_specs,
        out_specs=pl.BlockSpec((None, end_f, HW), lambda n: (n, 0, 0)),
        compiler_params=pltpu.CompilerParams(
            dimension_semantics=("parallel",),
            vmem_limit_bytes=32 * 1024 * 1024,
        ),
    )(*operands)

    return out.reshape(N, end_f, H, W)


def res_layer_ref(x, params):
    """Pure-JAX reference with the same math (high precision, NCHW/OIHW)."""
    hp = lax.Precision.HIGHEST
    dn = ("NCHW", "OIHW", "NCHW")

    def conv(inp, w, b, pad):
        y = lax.conv_general_dilated(inp, w, window_strides=(1, 1), padding=pad,
                                     dimension_numbers=dn, precision=hp)
        return y + b[None, :, None, None]

    y = jax.nn.relu(conv(x, params["w1"], params["b1"], "VALID"))
    y = jax.nn.relu(conv(y, params["w2"], params["b2"], [(1, 1), (1, 1)]))
    r = x
    if "w4" in params:
        r = jax.nn.relu(conv(x, params["w4"], params["b4"], "VALID"))
    return jax.nn.relu(conv(y, params["w3"], params["b3"], "VALID") + r)


if __name__ == "__main__":
    key = jax.random.PRNGKey(0)
    N, in_f, red_l, end_f, H, W = 2, 4, 8, 4, 16, 16
    ks = jax.random.split(key, 12)

    def init(k, shape, scale=0.3):
        return scale * jax.random.normal(k, shape, dtype=jnp.float32)

    x = jax.random.normal(ks[0], (N, in_f, H, W), dtype=jnp.float32)

    # Config 1: in_f == end_f (no correction branch).
    params = {
        "w1": init(ks[1], (red_l, in_f, 1, 1)),
        "b1": init(ks[2], (red_l,), 0.1),
        "w2": init(ks[3], (red_l, red_l, 3, 3)),
        "b2": init(ks[4], (red_l,), 0.1),
        "w3": init(ks[5], (end_f, red_l, 1, 1)),
        "b3": init(ks[6], (end_f,), 0.1),
    }
    out = jax.block_until_ready(res_layer_pallas(x, params))
    ref = res_layer_ref(x, params)
    assert out.shape == ref.shape == (N, end_f, H, W), (out.shape, ref.shape)
    assert bool(jnp.allclose(out, ref, atol=5e-3, rtol=5e-3)), \
        float(jnp.max(jnp.abs(out - ref)))

    # Config 2: in_f != end_f exercises the 1x1 "correction" residual conv.
    end_f2 = 8
    params2 = dict(params)
    params2["w3"] = init(ks[7], (end_f2, red_l, 1, 1))
    params2["b3"] = init(ks[8], (end_f2,), 0.1)
    params2["w4"] = init(ks[9], (end_f2, in_f, 1, 1))
    params2["b4"] = init(ks[10], (end_f2,), 0.1)

    out2 = jax.block_until_ready(res_layer_pallas(x, params2))
    ref2 = res_layer_ref(x, params2)
    assert out2.shape == ref2.shape == (N, end_f2, H, W), (out2.shape, ref2.shape)
    assert bool(jnp.allclose(out2, ref2, atol=5e-3, rtol=5e-3)), \
        float(jnp.max(jnp.abs(out2 - ref2)))

    print("KERNEL_OK")
</pallas_src>

<mosaic_0001>
module attributes {stable_mosaic.version = 11 : i64} {
  func.func @kernel(%arg0: i32, %arg1: memref<1x4x256xf32, #tpu.memory_space<vmem>>, %arg2: memref<8x4xf32, #tpu.memory_space<vmem>>, %arg3: memref<8x1xf32, #tpu.memory_space<vmem>>, %arg4: memref<9x8x8xf32, #tpu.memory_space<vmem>>, %arg5: memref<8x1xf32, #tpu.memory_space<vmem>>, %arg6: memref<4x8xf32, #tpu.memory_space<vmem>>, %arg7: memref<4x1xf32, #tpu.memory_space<vmem>>, %arg8: memref<1x4x256xf32, #tpu.memory_space<vmem>>) attributes {dimension_semantics = [#tpu.dimension_semantics<parallel>], iteration_bounds = array<i64: 2>, scalar_prefetch = 0 : i64, scratch_operands = 0 : i64, tpu.core_type = #tpu.core_type<tc>, window_params = [{transform_indices = @transform_0, window_bounds = array<i64: 1, 4, 256>}, {pipeline_mode = #tpu.pipeline_mode<synchronous>, transform_indices = @transform_1, window_bounds = array<i64: 8, 4>}, {pipeline_mode = #tpu.pipeline_mode<synchronous>, transform_indices = @transform_2, window_bounds = array<i64: 8, 1>}, {pipeline_mode = #tpu.pipeline_mode<synchronous>, transform_indices = @transform_3, window_bounds = array<i64: 9, 8, 8>}, {pipeline_mode = #tpu.pipeline_mode<synchronous>, transform_indices = @transform_4, window_bounds = array<i64: 8, 1>}, {pipeline_mode = #tpu.pipeline_mode<synchronous>, transform_indices = @transform_5, window_bounds = array<i64: 4, 8>}, {pipeline_mode = #tpu.pipeline_mode<synchronous>, transform_indices = @transform_6, window_bounds = array<i64: 4, 1>}, {transform_indices = @transform_7, window_bounds = array<i64: 1, 4, 256>}]} {
    %c0 = arith.constant 0 : index
    %c0_0 = arith.constant 0 : index
    %c0_1 = arith.constant 0 : index
    %0 = vector.load %arg1[%c0, %c0_0, %c0_1] : memref<1x4x256xf32, #tpu.memory_space<vmem>>, vector<1x4x256xf32>
    %1 = vector.shape_cast %0 : vector<1x4x256xf32> to vector<4x256xf32>
    %c0_2 = arith.constant 0 : index
    %c0_3 = arith.constant 0 : index
    %2 = vector.load %arg2[%c0_2, %c0_3] : memref<8x4xf32, #tpu.memory_space<vmem>>, vector<8x4xf32>
    %cst = arith.constant dense<0.000000e+00> : vector<8x256xf32>
    %3 = tpu.matmul %2, %1, %cst {dimension_numbers = #tpu.dot_dimension_numbers<[1], [0], [0], [1], [0, 0, 1, 1], [], []>} : vector<8x4xf32>, vector<4x256xf32>, vector<8x256xf32> -> vector<8x256xf32>
    %c0_4 = arith.constant 0 : index
    %c0_5 = arith.constant 0 : index
    %4 = vector.load %arg3[%c0_4, %c0_5] : memref<8x1xf32, #tpu.memory_space<vmem>>, vector<8x1xf32>
    %5 = vector.broadcast %4 : vector<8x1xf32> to vector<8x256xf32>
    %6 = arith.addf %3, %5 : vector<8x256xf32>
    %cst_6 = arith.constant 0.000000e+00 : f32
    %7 = vector.broadcast %cst_6 : f32 to vector<8x256xf32>
    %8 = arith.maximumf %6, %7 : vector<8x256xf32>
    %9 = tpu.iota {dimensions = array<i32: 1>} : vector<8x256xi32>
    %c16_i32 = arith.constant 16 : i32
    %c0_i32 = arith.constant 0 : i32
    %10 = arith.cmpi eq, %c16_i32, %c0_i32 : i32
    %c1_i32 = arith.constant 1 : i32
    %11 = arith.select %10, %c1_i32, %c16_i32 : i32
    %12 = vector.broadcast %11 : i32 to vector<8x256xi32>
    %13 = arith.remsi %9, %12 : vector<8x256xi32>
    %c0_i32_7 = arith.constant 0 : i32
    %14 = vector.broadcast %c0_i32_7 : i32 to vector<8x256xi32>
    %15 = arith.cmpi ne, %13, %14 : vector<8x256xi32>
    %c0_i32_8 = arith.constant 0 : i32
    %16 = vector.broadcast %c0_i32_8 : i32 to vector<8x256xi32>
    %17 = arith.cmpi slt, %13, %16 : vector<8x256xi32>
    %c0_i32_9 = arith.constant 0 : i32
    %18 = arith.cmpi slt, %11, %c0_i32_9 : i32
    %19 = vector.broadcast %18 : i1 to vector<8x256xi1>
    %20 = vector.broadcast %19 : vector<8x256xi1> to vector<8x256xi1>
    %21 = arith.xori %17, %20 : vector<8x256xi1>
    %22 = arith.andi %21, %15 : vector<8x256xi1>
    %23 = vector.broadcast %11 : i32 to vector<8x256xi32>
    %24 = arith.addi %13, %23 : vector<8x256xi32>
    %25 = arith.select %22, %24, %13 : vector<8x256xi1>, vector<8x256xi32>
    %c15_i32 = arith.constant 15 : i32
    %26 = vector.broadcast %c15_i32 : i32 to vector<8x256xi32>
    %27 = arith.cmpi ne, %25, %26 : vector<8x256xi32>
    %cst_10 = arith.constant 0.000000e+00 : f32
    %28 = vector.broadcast %cst_10 : f32 to vector<8x256xf32>
    %29 = arith.select %27, %8, %28 : vector<8x256xi1>, vector<8x256xf32>
    %c0_i32_11 = arith.constant 0 : i32
    %30 = vector.broadcast %c0_i32_11 : i32 to vector<8x256xi32>
    %31 = arith.cmpi ne, %25, %30 : vector<8x256xi32>
    %cst_12 = arith.constant 0.000000e+00 : f32
    %32 = vector.broadcast %cst_12 : f32 to vector<8x256xf32>
    %33 = arith.select %31, %8, %32 : vector<8x256xi1>, vector<8x256xf32>
    %cst_13 = arith.constant 0.000000e+00 : f32
    %34 = vector.broadcast %cst_13 : f32 to vector<8x256xf32>
    %cst_14 = arith.constant 0.000000e+00 : f32
    %35 = vector.broadcast %cst_14 : f32 to vector<8x17xf32>
    %36 = vector.extract_strided_slice %29 {offsets = [0, 0], sizes = [8, 239], strides = [1, 1]} : vector<8x256xf32> to vector<8x239xf32>
    %37 = tpu.concatenate %35, %36 in 1 : vector<8x17xf32>, vector<8x239xf32> -> vector<8x256xf32>
    %c0_15 = arith.constant 0 : index
    %c0_16 = arith.constant 0 : index
    %c0_17 = arith.constant 0 : index
    %38 = vector.load %arg4[%c0_15, %c0_16, %c0_17] : memref<9x8x8xf32, #tpu.memory_space<vmem>>, vector<1x8x8xf32>
    %39 = vector.shape_cast %38 : vector<1x8x8xf32> to vector<8x8xf32>
    %cst_18 = arith.constant dense<0.000000e+00> : vector<8x256xf32>
    %40 = tpu.matmul %39, %37, %cst_18 {dimension_numbers = #tpu.dot_dimension_numbers<[1], [0], [0], [1], [0, 0, 1, 1], [], []>} : vector<8x8xf32>, vector<8x256xf32>, vector<8x256xf32> -> vector<8x256xf32>
    %41 = arith.addf %34, %40 : vector<8x256xf32>
    %cst_19 = arith.constant 0.000000e+00 : f32
    %42 = vector.broadcast %cst_19 : f32 to vector<8x16xf32>
    %43 = vector.extract_strided_slice %8 {offsets = [0, 0], sizes = [8, 240], strides = [1, 1]} : vector<8x256xf32> to vector<8x240xf32>
    %44 = tpu.concatenate %42, %43 in 1 : vector<8x16xf32>, vector<8x240xf32> -> vector<8x256xf32>
    %c1 = arith.constant 1 : index
    %c0_20 = arith.constant 0 : index
    %c0_21 = arith.constant 0 : index
    %45 = vector.load %arg4[%c1, %c0_20, %c0_21] : memref<9x8x8xf32, #tpu.memory_space<vmem>>, vector<1x8x8xf32>
    %46 = vector.shape_cast %45 : vector<1x8x8xf32> to vector<8x8xf32>
    %cst_22 = arith.constant dense<0.000000e+00> : vector<8x256xf32>
    %47 = tpu.matmul %46, %44, %cst_22 {dimension_numbers = #tpu.dot_dimension_numbers<[1], [0], [0], [1], [0, 0, 1, 1], [], []>} : vector<8x8xf32>, vector<8x256xf32>, vector<8x256xf32> -> vector<8x256xf32>
    %48 = arith.addf %41, %47 : vector<8x256xf32>
    %cst_23 = arith.constant 0.000000e+00 : f32
    %49 = vector.broadcast %cst_23 : f32 to vector<8x15xf32>
    %50 = vector.extract_strided_slice %33 {offsets = [0, 0], sizes = [8, 241], strides = [1, 1]} : vector<8x256xf32> to vector<8x241xf32>
    %51 = tpu.concatenate %49, %50 in 1 : vector<8x15xf32>, vector<8x241xf32> -> vector<8x256xf32>
    %c2 = arith.constant 2 : index
    %c0_24 = arith.constant 0 : index
    %c0_25 = arith.constant 0 : index
    %52 = vector.load %arg4[%c2, %c0_24, %c0_25] : memref<9x8x8xf32, #tpu.memory_space<vmem>>, vector<1x8x8xf32>
    %53 = vector.shape_cast %52 : vector<1x8x8xf32> to vector<8x8xf32>
    %cst_26 = arith.constant dense<0.000000e+00> : vector<8x256xf32>
    %54 = tpu.matmul %53, %51, %cst_26 {dimension_numbers = #tpu.dot_dimension_numbers<[1], [0], [0], [1], [0, 0, 1, 1], [], []>} : vector<8x8xf32>, vector<8x256xf32>, vector<8x256xf32> -> vector<8x256xf32>
    %55 = arith.addf %48, %54 : vector<8x256xf32>
    %cst_27 = arith.constant 0.000000e+00 : f32
    %56 = vector.broadcast %cst_27 : f32 to vector<8x1xf32>
    %57 = vector.extract_strided_slice %29 {offsets = [0, 0], sizes = [8, 255], strides = [1, 1]} : vector<8x256xf32> to vector<8x255xf32>
    %58 = tpu.concatenate %56, %57 in 1 : vector<8x1xf32>, vector<8x255xf32> -> vector<8x256xf32>
    %c3 = arith.constant 3 : index
    %c0_28 = arith.constant 0 : index
    %c0_29 = arith.constant 0 : index
    %59 = vector.load %arg4[%c3, %c0_28, %c0_29] : memref<9x8x8xf32, #tpu.memory_space<vmem>>, vector<1x8x8xf32>
    %60 = vector.shape_cast %59 : vector<1x8x8xf32> to vector<8x8xf32>
    %cst_30 = arith.constant dense<0.000000e+00> : vector<8x256xf32>
    %61 = tpu.matmul %60, %58, %cst_30 {dimension_numbers = #tpu.dot_dimension_numbers<[1], [0], [0], [1], [0, 0, 1, 1], [], []>} : vector<8x8xf32>, vector<8x256xf32>, vector<8x256xf32> -> vector<8x256xf32>
    %62 = arith.addf %55, %61 : vector<8x256xf32>
    %c4 = arith.constant 4 : index
    %c0_31 = arith.constant 0 : index
    %c0_32 = arith.constant 0 : index
    %63 = vector.load %arg4[%c4, %c0_31, %c0_32] : memref<9x8x8xf32, #tpu.memory_space<vmem>>, vector<1x8x8xf32>
    %64 = vector.shape_cast %63 : vector<1x8x8xf32> to vector<8x8xf32>
    %cst_33 = arith.constant dense<0.000000e+00> : vector<8x256xf32>
    %65 = tpu.matmul %64, %8, %cst_33 {dimension_numbers = #tpu.dot_dimension_numbers<[1], [0], [0], [1], [0, 0, 1, 1], [], []>} : vector<8x8xf32>, vector<8x256xf32>, vector<8x256xf32> -> vector<8x256xf32>
    %66 = arith.addf %62, %65 : vector<8x256xf32>
    %cst_34 = arith.constant 0.000000e+00 : f32
    %67 = vector.broadcast %cst_34 : f32 to vector<8x1xf32>
    %68 = vector.extract_strided_slice %33 {offsets = [0, 1], sizes = [8, 255], strides = [1, 1]} : vector<8x256xf32> to vector<8x255xf32>
    %69 = tpu.concatenate %68, %67 in 1 : vector<8x255xf32>, vector<8x1xf32> -> vector<8x256xf32>
    %c5 = arith.constant 5 : index
    %c0_35 = arith.constant 0 : index
    %c0_36 = arith.constant 0 : index
    %70 = vector.load %arg4[%c5, %c0_35, %c0_36] : memref<9x8x8xf32, #tpu.memory_space<vmem>>, vector<1x8x8xf32>
    %71 = vector.shape_cast %70 : vector<1x8x8xf32> to vector<8x8xf32>
    %cst_37 = arith.constant dense<0.000000e+00> : vector<8x256xf32>
    %72 = tpu.matmul %71, %69, %cst_37 {dimension_numbers = #tpu.dot_dimension_numbers<[1], [0], [0], [1], [0, 0, 1, 1], [], []>} : vector<8x8xf32>, vector<8x256xf32>, vector<8x256xf32> -> vector<8x256xf32>
    %73 = arith.addf %66, %72 : vector<8x256xf32>
    %cst_38 = arith.constant 0.000000e+00 : f32
    %74 = vector.broadcast %cst_38 : f32 to vector<8x15xf32>
    %75 = vector.extract_strided_slice %29 {offsets = [0, 15], sizes = [8, 241], strides = [1, 1]} : vector<8x256xf32> to vector<8x241xf32>
    %76 = tpu.concatenate %75, %74 in 1 : vector<8x241xf32>, vector<8x15xf32> -> vector<8x256xf32>
    %c6 = arith.constant 6 : index
    %c0_39 = arith.constant 0 : index
    %c0_40 = arith.constant 0 : index
    %77 = vector.load %arg4[%c6, %c0_39, %c0_40] : memref<9x8x8xf32, #tpu.memory_space<vmem>>, vector<1x8x8xf32>
    %78 = vector.shape_cast %77 : vector<1x8x8xf32> to vector<8x8xf32>
    %cst_41 = arith.constant dense<0.000000e+00> : vector<8x256xf32>
    %79 = tpu.matmul %78, %76, %cst_41 {dimension_numbers = #tpu.dot_dimension_numbers<[1], [0], [0], [1], [0, 0, 1, 1], [], []>} : vector<8x8xf32>, vector<8x256xf32>, vector<8x256xf32> -> vector<8x256xf32>
    %80 = arith.addf %73, %79 : vector<8x256xf32>
    %cst_42 = arith.constant 0.000000e+00 : f32
    %81 = vector.broadcast %cst_42 : f32 to vector<8x16xf32>
    %82 = vector.extract_strided_slice %8 {offsets = [0, 16], sizes = [8, 240], strides = [1, 1]} : vector<8x256xf32> to vector<8x240xf32>
    %83 = tpu.concatenate %82, %81 in 1 : vector<8x240xf32>, vector<8x16xf32> -> vector<8x256xf32>
    %c7 = arith.constant 7 : index
    %c0_43 = arith.constant 0 : index
    %c0_44 = arith.constant 0 : index
    %84 = vector.load %arg4[%c7, %c0_43, %c0_44] : memref<9x8x8xf32, #tpu.memory_space<vmem>>, vector<1x8x8xf32>
    %85 = vector.shape_cast %84 : vector<1x8x8xf32> to vector<8x8xf32>
    %cst_45 = arith.constant dense<0.000000e+00> : vector<8x256xf32>
    %86 = tpu.matmul %85, %83, %cst_45 {dimension_numbers = #tpu.dot_dimension_numbers<[1], [0], [0], [1], [0, 0, 1, 1], [], []>} : vector<8x8xf32>, vector<8x256xf32>, vector<8x256xf32> -> vector<8x256xf32>
    %87 = arith.addf %80, %86 : vector<8x256xf32>
    %cst_46 = arith.constant 0.000000e+00 : f32
    %88 = vector.broadcast %cst_46 : f32 to vector<8x17xf32>
    %89 = vector.extract_strided_slice %33 {offsets = [0, 17], sizes = [8, 239], strides = [1, 1]} : vector<8x256xf32> to vector<8x239xf32>
    %90 = tpu.concatenate %89, %88 in 1 : vector<8x239xf32>, vector<8x17xf32> -> vector<8x256xf32>
    %c8 = arith.constant 8 : index
    %c0_47 = arith.constant 0 : index
    %c0_48 = arith.constant 0 : index
    %91 = vector.load %arg4[%c8, %c0_47, %c0_48] : memref<9x8x8xf32, #tpu.memory_space<vmem>>, vector<1x8x8xf32>
    %92 = vector.shape_cast %91 : vector<1x8x8xf32> to vector<8x8xf32>
    %cst_49 = arith.constant dense<0.000000e+00> : vector<8x256xf32>
    %93 = tpu.matmul %92, %90, %cst_49 {dimension_numbers = #tpu.dot_dimension_numbers<[1], [0], [0], [1], [0, 0, 1, 1], [], []>} : vector<8x8xf32>, vector<8x256xf32>, vector<8x256xf32> -> vector<8x256xf32>
    %94 = arith.addf %87, %93 : vector<8x256xf32>
    %c0_50 = arith.constant 0 : index
    %c0_51 = arith.constant 0 : index
    %95 = vector.load %arg5[%c0_50, %c0_51] : memref<8x1xf32, #tpu.memory_space<vmem>>, vector<8x1xf32>
    %96 = vector.broadcast %95 : vector<8x1xf32> to vector<8x256xf32>
    %97 = arith.addf %94, %96 : vector<8x256xf32>
    %cst_52 = arith.constant 0.000000e+00 : f32
    %98 = vector.broadcast %cst_52 : f32 to vector<8x256xf32>
    %99 = arith.maximumf %97, %98 : vector<8x256xf32>
    %c0_53 = arith.constant 0 : index
    %c0_54 = arith.constant 0 : index
    %100 = vector.load %arg6[%c0_53, %c0_54] : memref<4x8xf32, #tpu.memory_space<vmem>>, vector<4x8xf32>
    %cst_55 = arith.constant dense<0.000000e+00> : vector<4x256xf32>
    %101 = tpu.matmul %100, %99, %cst_55 {dimension_numbers = #tpu.dot_dimension_numbers<[1], [0], [0], [1], [0, 0, 1, 1], [], []>} : vector<4x8xf32>, vector<8x256xf32>, vector<4x256xf32> -> vector<4x256xf32>
    %c0_56 = arith.constant 0 : index
    %c0_57 = arith.constant 0 : index
    %102 = vector.load %arg7[%c0_56, %c0_57] : memref<4x1xf32, #tpu.memory_space<vmem>>, vector<4x1xf32>
    %103 = vector.broadcast %102 : vector<4x1xf32> to vector<4x256xf32>
    %104 = arith.addf %101, %103 : vector<4x256xf32>
    %105 = arith.addf %104, %1 : vector<4x256xf32>
    %cst_58 = arith.constant 0.000000e+00 : f32
    %106 = vector.broadcast %cst_58 : f32 to vector<4x256xf32>
    %107 = arith.maximumf %105, %106 : vector<4x256xf32>
    %c0_59 = arith.constant 0 : index
    %c0_60 = arith.constant 0 : index
    %c0_61 = arith.constant 0 : index
    %108 = vector.load %arg8[%c0_59, %c0_60, %c0_61] : memref<1x4x256xf32, #tpu.memory_space<vmem>>, vector<1x4x256xf32>
    %109 = vector.shape_cast %108 : vector<1x4x256xf32> to vector<4x256xf32>
    %110 = vector.shape_cast %107 : vector<4x256xf32> to vector<1x4x256xf32>
    tpu.vector_store %arg8[%c0_59, %c0_60, %c0_61], %110 {strides = array<i32>} : memref<1x4x256xf32, #tpu.memory_space<vmem>>, vector<1x4x256xf32>,
    return
  }
  func.func @transform_0(%arg0: i32) -> (i32, i32, i32) {
    %c0_i32 = arith.constant 0 : i32
    %c0_i32_0 = arith.constant 0 : i32
    %c0_i32_1 = arith.constant 0 : i32
    return %arg0, %c0_i32, %c0_i32_0 : i32, i32, i32
  }
  func.func @transform_1(%arg0: i32) -> (i32, i32) {
    %c0_i32 = arith.constant 0 : i32
    %c0_i32_0 = arith.constant 0 : i32
    %c0_i32_1 = arith.constant 0 : i32
    return %c0_i32, %c0_i32_0 : i32, i32
  }
  func.func @transform_2(%arg0: i32) -> (i32, i32) {
    %c0_i32 = arith.constant 0 : i32
    %c0_i32_0 = arith.constant 0 : i32
    %c0_i32_1 = arith.constant 0 : i32
    return %c0_i32, %c0_i32_0 : i32, i32
  }
  func.func @transform_3(%arg0: i32) -> (i32, i32, i32) {
    %c0_i32 = arith.constant 0 : i32
    %c0_i32_0 = arith.constant 0 : i32
    %c0_i32_1 = arith.constant 0 : i32
    %c0_i32_2 = arith.constant 0 : i32
    return %c0_i32, %c0_i32_0, %c0_i32_1 : i32, i32, i32
  }
  func.func @transform_4(%arg0: i32) -> (i32, i32) {
    %c0_i32 = arith.constant 0 : i32
    %c0_i32_0 = arith.constant 0 : i32
    %c0_i32_1 = arith.constant 0 : i32
    return %c0_i32, %c0_i32_0 : i32, i32
  }
  func.func @transform_5(%arg0: i32) -> (i32, i32) {
    %c0_i32 = arith.constant 0 : i32
    %c0_i32_0 = arith.constant 0 : i32
    %c0_i32_1 = arith.constant 0 : i32
    return %c0_i32, %c0_i32_0 : i32, i32
  }
  func.func @transform_6(%arg0: i32) -> (i32, i32) {
    %c0_i32 = arith.constant 0 : i32
    %c0_i32_0 = arith.constant 0 : i32
    %c0_i32_1 = arith.constant 0 : i32
    return %c0_i32, %c0_i32_0 : i32, i32
  }
  func.func @transform_7(%arg0: i32) -> (i32, i32, i32) {
    %c0_i32 = arith.constant 0 : i32
    %c0_i32_0 = arith.constant 0 : i32
    %c0_i32_1 = arith.constant 0 : i32
    return %arg0, %c0_i32, %c0_i32_0 : i32, i32, i32
  }
}

</mosaic_0001>

<llo_original>
// kernel: tpu_custom_call.1
$region0: #{tpu_custom_call.1}
  #allocation0 [shape = 'u32[]', space=smem, size = 0x4, offset = 0x4, fixed_abs, tag = 'smem constant byte address 0x4 - core index']
  #allocation1 [shape = 'u32[144,128]{1,0:T(1,128)}', space=vmem, size = 0x12000, scoped, tag = 'internal scratch']
  %s0 = inlined_call_operand.vmem [shape: f32[2,4,256], index: 0, kind: input, shape index: {}]
  %s1 = inlined_call_operand.vmem [shape: f32[8,4], index: 1, kind: input, shape index: {}]
  %s2 = inlined_call_operand.vmem [shape: f32[8,1], index: 2, kind: input, shape index: {}]
  %s3 = inlined_call_operand.vmem [shape: f32[9,8,8], index: 3, kind: input, shape index: {}]
  %s4 = inlined_call_operand.vmem [shape: f32[8,1], index: 4, kind: input, shape index: {}]
  %s5 = inlined_call_operand.vmem [shape: f32[4,8], index: 5, kind: input, shape index: {}]
  %s6 = inlined_call_operand.vmem [shape: f32[4,1], index: 6, kind: input, shape index: {}]
  %s7 = inlined_call_operand.hbm [shape: f32[2,4,256], index: 7, kind: output, shape index: {}]
  %s8 = sld [smem:[#allocation0]]
  $region61: #{tpu_custom_call.1} parent=0
    _
  %s10 = ssub.s32 1, %s8
  %s11 = scalar_select 0, %s10, %s8
  $region1: #{tpu_custom_call.1} parent=0
    #allocation2 [shape = 'u8[8192]{0}', space=vmem, size = 0x2000, scoped, tag = 'output window, operand 0']
    #allocation3 [shape = 's32[2]{0}', space=sflag, size = 0x8, scoped, tag = 'scoped memory for tpu_custom_call.1']
    %12 = vsyncpa [#allocation3], 0
    %s13 = scalar_lea.sflag [#allocation3], 1
    %14 = vsyncpa %s13, 0
    loop: start=0, step=1, limit=4
    $region2: #{tpu_custom_call.1} parent=1 // loop_pre_header
      _
    $region3: #{tpu_custom_call.1} parent=1 // loop_header
      %s16 = sphi 0, %s20
      %p17 = scmp.ge.s32.totalorder %s16, 4
      %s26 = sphi 0, %s28
      %s29 = sphi 0, %s26
      %s30 = sphi 0, %s29
      %s46 = sphi 0, %s30
      %s50 = sphi 0, %s50
      %s52 = sphi 0, %s50
      %s53 = sphi 0, %s52
      %s67 = sphi 0, %s53
      %s71 = sphi 0, %s71
      %s73 = sphi 0, %s71
      %s74 = sphi 0, %s73
      %s88 = sphi 0, %s74
      %s92 = sphi 0, %s92
      %s94 = sphi 0, %s92
      %s95 = sphi 0, %s94
      %s109 = sphi 0, %s95
      %s113 = sphi 0, %s113
      %s115 = sphi 0, %s113
      %s116 = sphi 0, %s115
      %s130 = sphi 0, %s116
      %s134 = sphi 0, %s134
      %s136 = sphi 0, %s134
      %s137 = sphi 0, %s136
      %s151 = sphi 0, %s137
      %s155 = sphi 0, %s155
      %s157 = sphi 0, %s155
      %s158 = sphi 0, %s157
      %s172 = sphi 0, %s158
      %s178 = sphi 0, %s180
      %s181 = sphi 0, %s178
      %s182 = sphi 0, %s181
      %s198 = sphi 0, %s182
    $region4: #{tpu_custom_call.1} parent=1 // loop_header_branch
      %19 = sbr.rel (%p17) target = $region8
    $region5: #{tpu_custom_call.1} parent=1 // loop_body
      %s21 = ssub.s32 %s16, 1
      %s22 = ssub.s32 %s16, 2
      %s23 = sadd.s32 %s16, 1
      %s24 = ssub.s32 %s16, %s23
      %p25 = scmp.eq.s32.totalorder %s24, 0
      %s27 = sadd.s32 %s26, 1
      %s28 = scalar_select %p25, %s26, %s27
      %p31 = pneg %p25
      %p32 = scmp.eq.s32.totalorder %s16, 1
      %p33 = por %p31, %p32
      %p34 = scmp.ne.s32.totalorder %s26, %s29
      %p35 = scmp.eq.s32.totalorder %s16, 0
      %p36 = por %p34, %p35
      %p37 = scmp.ne.s32.totalorder %s26, %s29
      %p38 = scmp.eq.s32.totalorder %s21, 1
      %p39 = por %p37, %p38
      %p40 = scmp.ne.s32.totalorder %s29, %s30
      %p41 = scmp.eq.s32.totalorder %s21, 0
      %p42 = por %p40, %p41
      %p43 = scmp.ne.s32.totalorder %s29, %s30
      %p44 = scmp.eq.s32.totalorder %s22, 1
      %p45 = por %p43, %p44
      %p47 = scmp.ne.s32.totalorder %s30, %s46
      %p48 = scmp.eq.s32.totalorder %s22, 0
      %p49 = por %p47, %p48
      %s51 = sadd.s32 %s50, 1
      %p54 = scmp.eq.s32.totalorder %s16, 1
      %p55 = scmp.ne.s32.totalorder %s50, %s52
      %p56 = scmp.eq.s32.totalorder %s16, 0
      %p57 = por %p55, %p56
      %p58 = scmp.ne.s32.totalorder %s50, %s52
      %p59 = scmp.eq.s32.totalorder %s21, 1
      %p60 = por %p58, %p59
      %p61 = scmp.ne.s32.totalorder %s52, %s53
      %p62 = scmp.eq.s32.totalorder %s21, 0
      %p63 = por %p61, %p62
      %p64 = scmp.ne.s32.totalorder %s52, %s53
      %p65 = scmp.eq.s32.totalorder %s22, 1
      %p66 = por %p64, %p65
      %p68 = scmp.ne.s32.totalorder %s53, %s67
      %p69 = scmp.eq.s32.totalorder %s22, 0
      %p70 = por %p68, %p69
      %s72 = sadd.s32 %s71, 1
      %p75 = scmp.eq.s32.totalorder %s16, 1
      %p76 = scmp.ne.s32.totalorder %s71, %s73
      %p77 = scmp.eq.s32.totalorder %s16, 0
      %p78 = por %p76, %p77
      %p79 = scmp.ne.s32.totalorder %s71, %s73
      %p80 = scmp.eq.s32.totalorder %s21, 1
      %p81 = por %p79, %p80
      %p82 = scmp.ne.s32.totalorder %s73, %s74
      %p83 = scmp.eq.s32.totalorder %s21, 0
      %p84 = por %p82, %p83
      %p85 = scmp.ne.s32.totalorder %s73, %s74
      %p86 = scmp.eq.s32.totalorder %s22, 1
      %p87 = por %p85, %p86
      %p89 = scmp.ne.s32.totalorder %s74, %s88
      %p90 = scmp.eq.s32.totalorder %s22, 0
      %p91 = por %p89, %p90
      %s93 = sadd.s32 %s92, 1
      %p96 = scmp.eq.s32.totalorder %s16, 1
      %p97 = scmp.ne.s32.totalorder %s92, %s94
      %p98 = scmp.eq.s32.totalorder %s16, 0
      %p99 = por %p97, %p98
      %p100 = scmp.ne.s32.totalorder %s92, %s94
      %p101 = scmp.eq.s32.totalorder %s21, 1
      %p102 = por %p100, %p101
      %p103 = scmp.ne.s32.totalorder %s94, %s95
      %p104 = scmp.eq.s32.totalorder %s21, 0
      %p105 = por %p103, %p104
      %p106 = scmp.ne.s32.totalorder %s94, %s95
      %p107 = scmp.eq.s32.totalorder %s22, 1
      %p108 = por %p106, %p107
      %p110 = scmp.ne.s32.totalorder %s95, %s109
      %p111 = scmp.eq.s32.totalorder %s22, 0
      %p112 = por %p110, %p111
      %s114 = sadd.s32 %s113, 1
      %p117 = scmp.eq.s32.totalorder %s16, 1
      %p118 = scmp.ne.s32.totalorder %s113, %s115
      %p119 = scmp.eq.s32.totalorder %s16, 0
      %p120 = por %p118, %p119
      %p121 = scmp.ne.s32.totalorder %s113, %s115
      %p122 = scmp.eq.s32.totalorder %s21, 1
      %p123 = por %p121, %p122
      %p124 = scmp.ne.s32.totalorder %s115, %s116
      %p125 = scmp.eq.s32.totalorder %s21, 0
      %p126 = por %p124, %p125
      %p127 = scmp.ne.s32.totalorder %s115, %s116
      %p128 = scmp.eq.s32.totalorder %s22, 1
      %p129 = por %p127, %p128
      %p131 = scmp.ne.s32.totalorder %s116, %s130
      %p132 = scmp.eq.s32.totalorder %s22, 0
      %p133 = por %p131, %p132
      %s135 = sadd.s32 %s134, 1
      %p138 = scmp.eq.s32.totalorder %s16, 1
      %p139 = scmp.ne.s32.totalorder %s134, %s136
      %p140 = scmp.eq.s32.totalorder %s16, 0
      %p141 = por %p139, %p140
      %p142 = scmp.ne.s32.totalorder %s134, %s136
      %p143 = scmp.eq.s32.totalorder %s21, 1
      %p144 = por %p142, %p143
      %p145 = scmp.ne.s32.totalorder %s136, %s137
      %p146 = scmp.eq.s32.totalorder %s21, 0
      %p147 = por %p145, %p146
      %p148 = scmp.ne.s32.totalorder %s136, %s137
      %p149 = scmp.eq.s32.totalorder %s22, 1
      %p150 = por %p148, %p149
      %p152 = scmp.ne.s32.totalorder %s137, %s151
      %p153 = scmp.eq.s32.totalorder %s22, 0
      %p154 = por %p152, %p153
      %s156 = sadd.s32 %s155, 1
      %p159 = scmp.eq.s32.totalorder %s16, 1
      %p160 = scmp.ne.s32.totalorder %s155, %s157
      %p161 = scmp.eq.s32.totalorder %s16, 0
      %p162 = por %p160, %p161
      %p163 = scmp.ne.s32.totalorder %s155, %s157
      %p164 = scmp.eq.s32.totalorder %s21, 1
      %p165 = por %p163, %p164
      %p166 = scmp.ne.s32.totalorder %s157, %s158
      %p167 = scmp.eq.s32.totalorder %s21, 0
      %p168 = por %p166, %p167
      %p169 = scmp.ne.s32.totalorder %s157, %s158
      %p170 = scmp.eq.s32.totalorder %s22, 1
      %p171 = por %p169, %p170
      %p173 = scmp.ne.s32.totalorder %s158, %s172
      %p174 = scmp.eq.s32.totalorder %s22, 0
      %p175 = por %p173, %p174
      %s176 = ssub.s32 %s16, %s23
      %p177 = scmp.eq.s32.totalorder %s176, 0
      %s179 = sadd.s32 %s178, 1
      %s180 = scalar_select %p177, %s178, %s179
      %p183 = pneg %p177
      %p184 = scmp.eq.s32.totalorder %s16, 1
      %p185 = por %p183, %p184
      %p186 = scmp.ne.s32.totalorder %s178, %s181
      %p187 = scmp.eq.s32.totalorder %s16, 0
      %p188 = por %p186, %p187
      %p189 = scmp.ne.s32.totalorder %s178, %s181
      %p190 = scmp.eq.s32.totalorder %s21, 1
      %p191 = por %p189, %p190
      %p192 = scmp.ne.s32.totalorder %s181, %s182
      %p193 = scmp.eq.s32.totalorder %s21, 0
      %p194 = por %p192, %p193
      %p195 = scmp.ne.s32.totalorder %s181, %s182
      %p196 = scmp.eq.s32.totalorder %s22, 1
      %p197 = por %p195, %p196
      %p199 = scmp.ne.s32.totalorder %s182, %s198
      %p200 = scmp.eq.s32.totalorder %s22, 0
      %p201 = por %p199, %p200
      %p202 = scmp.le.s32.totalorder 1, %s16
      %p203 = scmp.lt.s32.totalorder %s16, 3
      %p204 = pnand %p202, %p203
      %p205 = pneg %p204
      // Predicated region
      $region9: #{tpu_custom_call.1} parent=5 // pred_check
        _
      $region10: #{tpu_custom_call.1} parent=5 // pred_check_branch
        %207 = sbr.rel (%p204) target = $region12
      $region11: #{tpu_custom_call.1} parent=5 // pred_region
        %s208 = ssub.s32 %s16, 1
        // Predicated region
        $region13: #{tpu_custom_call.1} parent=11 // pred_check
          %p209 = pneg %p63
        $region14: #{tpu_custom_call.1} parent=11 // pred_check_branch
          %211 = sbr.rel (%p209) target = $region16
        $region15: #{tpu_custom_call.1} parent=11 // pred_region
          _
        $region16: #{tpu_custom_call.1} parent=11 // pred_fallthru
          _
        // Predicated region
        $region17: #{tpu_custom_call.1} parent=11 // pred_check
          %p212 = pneg %p84
        $region18: #{tpu_custom_call.1} parent=11 // pred_check_branch
          %214 = sbr.rel (%p212) target = $region20
        $region19: #{tpu_custom_call.1} parent=11 // pred_region
          _
        $region20: #{tpu_custom_call.1} parent=11 // pred_fallthru
          _
        // Predicated region
        $region21: #{tpu_custom_call.1} parent=11 // pred_check
          %p215 = pneg %p105
        $region22: #{tpu_custom_call.1} parent=11 // pred_check_branch
          %217 = sbr.rel (%p215) target = $region24
        $region23: #{tpu_custom_call.1} parent=11 // pred_region
          _
        $region24: #{tpu_custom_call.1} parent=11 // pred_fallthru
          _
        // Predicated region
        $region25: #{tpu_custom_call.1} parent=11 // pred_check
          %p218 = pneg %p126
        $region26: #{tpu_custom_call.1} parent=11 // pred_check_branch
          %220 = sbr.rel (%p218) target = $region28
        $region27: #{tpu_custom_call.1} parent=11 // pred_region
          _
        $region28: #{tpu_custom_call.1} parent=11 // pred_fallthru
          _
        // Predicated region
        $region29: #{tpu_custom_call.1} parent=11 // pred_check
          %p221 = pneg %p147
        $region30: #{tpu_custom_call.1} parent=11 // pred_check_branch
          %223 = sbr.rel (%p221) target = $region32
        $region31: #{tpu_custom_call.1} parent=11 // pred_region
          _
        $region32: #{tpu_custom_call.1} parent=11 // pred_fallthru
          _
        // Predicated region
        $region33: #{tpu_custom_call.1} parent=11 // pred_check
          %p224 = pneg %p168
        $region34: #{tpu_custom_call.1} parent=11 // pred_check_branch
          %226 = sbr.rel (%p224) target = $region36
        $region35: #{tpu_custom_call.1} parent=11 // pred_region
          _
        $region36: #{tpu_custom_call.1} parent=11 // pred_fallthru
          _
      $region12: #{tpu_custom_call.1} parent=5 // pred_fallthru
        _
      %p227 = scmp.lt.s32.totalorder %s16, 2
      // Predicated region
      $region37: #{tpu_custom_call.1} parent=5 // pred_check
        %p228 = pneg %p227
      $region38: #{tpu_custom_call.1} parent=5 // pred_check_branch
        %230 = sbr.rel (%p228) target = $region40
      $region39: #{tpu_custom_call.1} parent=5 // pred_region
        // Predicated region
        $region41: #{tpu_custom_call.1} parent=39 // pred_check
          %p231 = pneg %p36
        $region42: #{tpu_custom_call.1} parent=39 // pred_check_branch
          %233 = sbr.rel (%p231) target = $region44
        $region43: #{tpu_custom_call.1} parent=39 // pred_region
          %p234 = scmp.lt.s32.totalorder %s16, 1
          %s235 = scalar_select %p234, %s16, 1
          %s236 = smul.addr %s235, 2
          %s237 = smul.addr %s236, 4
          %s238 = scalar_lea.vmem %s0, %s237
        $region44: #{tpu_custom_call.1} parent=39 // pred_fallthru
          _
      $region40: #{tpu_custom_call.1} parent=5 // pred_fallthru
        _
      %p239 = scmp.le.s32.totalorder 1, %s16
      %p240 = scmp.lt.s32.totalorder %s16, 3
      %p241 = pnand %p239, %p240
      %p242 = pneg %p241
      // Predicated region
      $region45: #{tpu_custom_call.1} parent=5 // pred_check
        _
      $region46: #{tpu_custom_call.1} parent=5 // pred_check_branch
        %244 = sbr.rel (%p241) target = $region48
      $region47: #{tpu_custom_call.1} parent=5 // pred_region
        %s245 = ssub.s32 %s16, 1
        %p246 = scmp.lt.s32.totalorder %s21, 1
        %s247 = scalar_select %p246, %s21, 1
        %s248 = smul.addr %s247, 2
        %s249 = smul.addr %s248, 4
        %s250 = scalar_lea.vmem %s0, %s249
        %p251 = pneg %p42
        %p252 = pneg %p39
        %p253 = pneg %p63
        %p254 = pneg %p60
        %p255 = pneg %p84
        %p256 = pneg %p81
        %p257 = pneg %p105
        %p258 = pneg %p102
        %p259 = pneg %p126
        %p260 = pneg %p123
        %p261 = pneg %p147
        %p262 = pneg %p144
        %p263 = pneg %p168
        %p264 = pneg %p165
        %p265 = pneg %p194
        %p266 = pneg %p191
        %s267 = sand.u32 %s181, 1
        %s268 = scalar_lea.sflag [#allocation3], %s267
        %s269 = sand.u32 %s181, 1
        %s270 = smul.addr %s269, 8
        %s271 = scalar_lea.vmem [#allocation2], %s270
        %p272 = scmp.lt.s32.totalorder %s21, 1
        %s273 = scalar_select %p272, %s21, 1
        %s274 = smul.addr %s273, 2
        %s275 = smul.addr %s274, 4
        %s276 = scalar_lea.vmem %s0, %s275
        %v277 = vld [vmem:[%s276] sm:$0xff]
        %v278 = vld [vmem:[%s1] sm:$0xff]
        %v279 = vld [vmem:[%s2] sm:$0xff]
        %281 = vset.pattern.permute.xlu0 0
        %282 = vperm.xlu0 %281, %v279
        %v283 = vpop.permute.xlu0 %282
        %v286 = vcombine.high %v277, %v277
        %vm287 = vcmask 31744
        %v289 = vsel %vm287, %v278, 0
        %vm291 = vcmask 1043456
        %v292 = vsel %vm291, %v277, 0
        %v294 = vsel %vm291, %v286, 0
        %296 = vmatprep.subr.mxu0 0.0
        %297 = vmatpush1.msra.mxu0 0.0
        %298 = vmatprep.subr.mxu0 0.0
        %299 = vmatpush1.msra.mxu0 0.0
        %300 = vmatprep.subr.mxu0 0.0
        %301 = vmatpush1.msra.mxu0 0.0
        %302 = vmatprep.subr.mxu0 0.0
        %303 = vmatpush1.msra.mxu0 0.0
        %304 = vmatprep.subr.mxu0 0.0
        %305 = vmatpush1.msra.mxu0 0.0
        %306 = vmatprep.subr.mxu0 0.0
        %307 = vmatpush1.msra.mxu0 0.0
        %308 = vmatprep.subr.mxu0 0.0
        %309 = vmatpush1.msra.mxu0 0.0
        %310 = vmatprep.subr.mxu0 0.0
        %311 = vmatpush1.msra.mxu0 0.0
        %312 = vmatprep.subr.mxu0 0.0
        %313 = vmatpush1.msra.mxu0 0.0
        %314 = vmatprep.subr.mxu0 0.0
        %315 = vmatpush1.msra.mxu0 0.0
        %316 = vmatprep.subr.mxu0 0.0
        %317 = vmatpush1.msra.mxu0 0.0
        %318 = vmatprep.subr.mxu0 0.0
        %319 = vmatpush1.msra.mxu0 0.0
        %320 = vmatprep.subr.mxu0 0.0
        %321 = vmatpush1.msra.mxu0 0.0
        %322 = vmatprep.subr.mxu0 0.0
        %323 = vmatpush1.msra.mxu0 0.0
        %324 = vmatprep.subr.mxu0 0.0
        %325 = vmatpush1.msra.mxu0 0.0
        %326 = vmatprep.subr.mxu0 %v294
        %327 = vmatpush1.msra.mxu0 %v292
        %328 = vmatprep.subr.mxu0 0.0
        %329 = vmatpush2.msra.mxu0 0.0
        %330 = vmatprep.subr.mxu0 0.0
        %331 = vmatpush2.msra.mxu0 0.0
        %332 = vmatprep.subr.mxu0 0.0
        %333 = vmatpush2.msra.mxu0 0.0
        %334 = vmatprep.subr.mxu0 0.0
        %335 = vmatpush2.msra.mxu0 0.0
        %336 = vmatprep.subr.mxu0 0.0
        %337 = vmatpush2.msra.mxu0 0.0
        %338 = vmatprep.subr.mxu0 0.0
        %339 = vmatpush2.msra.mxu0 0.0
        %340 = vmatprep.subr.mxu0 0.0
        %341 = vmatpush2.msra.mxu0 0.0
        %342 = vmatprep.subr.mxu0 0.0
        %343 = vmatpush2.msra.mxu0 0.0
        %344 = vmatprep.subr.mxu0 0.0
        %345 = vmatpush2.msra.mxu0 0.0
        %346 = vmatprep.subr.mxu0 0.0
        %347 = vmatpush2.msra.mxu0 0.0
        %348 = vmatprep.subr.mxu0 0.0
        %349 = vmatpush2.msra.mxu0 0.0
        %350 = vmatprep.subr.mxu0 0.0
        %351 = vmatpush2.msra.mxu0 0.0
        %352 = vmatprep.subr.mxu0 0.0
        %353 = vmatpush2.msra.mxu0 0.0
        %354 = vmatprep.subr.mxu0 0.0
        %355 = vmatpush2.msra.mxu0 0.0
        %356 = vmatprep.subr.mxu0 0.0
        %357 = vmatpush2.msra.mxu0 0.0
        %358 = vmatprep.subr.mxu0 0.0
        %359 = vmatpush2.msra.mxu0 0.0
        %360 = vmatprep.mubr.f32.mxu0 0.0
        %361 = vmatmul.mubr.f32.gmra.mxu0 %v289
        %v362 = vpop.f32.mrf.mxu0
        %v363 = vadd.f32 %v283, %v362
        %v364 = vpop.f32.mrf.mxu0
        %v365 = vadd.f32 %v283, %v364
        %366 = vdwg.mxu0
        %v367 = vmax.f32 %v363, 0.0
        %v368 = vmax.f32 %v365, 0.0
        %v369 = vlaneseq
        %v370 = vand.u32 %v369, 127
        %v371 = vadd.s32 %v370, 128
        %vm372 = vcmp.lt.s32.totalorder %v370, 0
        %v373 = vsub.s32 0, %v370
        %v374 = vsel %vm372, %v373, %v370
        %v375 = vshrl.u32 %v374, 4
        %v376 = vand.u32 %v374, 15
        %v377 = vsub.s32 0, %v376
        %v378 = vsel %vm372, %v377, %v376
        %vm379 = vcmp.lt.s32.totalorder %v371, 0
        %v380 = vsub.s32 0, %v371
        %v381 = vsel %vm379, %v380, %v371
        %v382 = vshrl.u32 %v381, 4
        %v383 = vand.u32 %v381, 15
        %v384 = vsub.s32 0, %v383
        %v385 = vsel %vm379, %v384, %v383
        %vm386 = vcmp.ne.s32.totalorder %v378, 0
        %vm387 = vcmp.ne.s32.totalorder %v385, 0
        %vm388 = vcmp.lt.s32.totalorder %v378, 0
        %vm389 = vcmp.lt.s32.totalorder %v385, 0
        %vm390 = vmand %vm388, %vm386
        %vm391 = vmand %vm389, %vm387
        %v392 = vadd.s32 %v378, 16
        %v393 = vadd.s32 %v385, 16
        %v394 = vsel %vm390, %v392, %v378
        %v395 = vsel %vm391, %v393, %v385
        %vm396 = vcmp.ne.s32.totalorder %v394, 15
        %vm397 = vcmp.ne.s32.totalorder %v395, 15
        %v398 = vsel %vm396, %v367, 0.0
        %v399 = vsel %vm397, %v368, 0.0
        %vm400 = vcmp.ne.s32.totalorder %v394, 0
        %vm401 = vcmp.ne.s32.totalorder %v395, 0
        %v402 = vsel %vm400, %v367, 0.0
        %v403 = vsel %vm401, %v368, 0.0
        %406 = vrot.lane.b32.xlu0 %v398, 17
        %v407 = vpop.permute.xlu0 %406
        %408 = vrot.lane.b32.xlu0 %v399, 17
        %v409 = vpop.permute.xlu0 %408
        %vm410 = vcmask 138240
        %v411 = vsel %vm410, %v407, %v409
        %v414 = vsel %vm410, 0.0, %v407
        %v415 = vld [vmem:[%s3] sm:$0xff]
        %418 = vrot.lane.b32.xlu0 %v367, 16
        %v419 = vpop.permute.xlu0 %418
        %420 = vrot.lane.b32.xlu0 %v368, 16
        %v421 = vpop.permute.xlu0 %420
        %vm422 = vcmask 130048
        %v423 = vsel %vm422, %v419, %v421
        %v426 = vsel %vm422, 0.0, %v419
        %s427 = scalar_lea.vmem %s3, 8
        %v428 = vld [vmem:[%s427] sm:$0xff]
        %vm429 = vcmask 64512
        %v431 = vsel %vm429, %v428, 0
        %433 = vmatprep.subr.mxu0 0.0
        %434 = vmatpush1.msra.mxu0 0.0
        %435 = vmatprep.subr.mxu0 0.0
        %436 = vmatpush1.msra.mxu0 0.0
        %437 = vmatprep.subr.mxu0 0.0
        %438 = vmatpush1.msra.mxu0 0.0
        %439 = vmatprep.subr.mxu0 0.0
        %440 = vmatpush1.msra.mxu0 0.0
        %441 = vmatprep.subr.mxu0 0.0
        %442 = vmatpush1.msra.mxu0 0.0
        %443 = vmatprep.subr.mxu0 0.0
        %444 = vmatpush1.msra.mxu0 0.0
        %445 = vmatprep.subr.mxu0 0.0
        %446 = vmatpush1.msra.mxu0 0.0
        %447 = vmatprep.subr.mxu0 0.0
        %448 = vmatpush1.msra.mxu0 0.0
        %449 = vmatprep.subr.mxu0 0.0
        %450 = vmatpush1.msra.mxu0 0.0
        %451 = vmatprep.subr.mxu0 0.0
        %452 = vmatpush1.msra.mxu0 0.0
        %453 = vmatprep.subr.mxu0 0.0
        %454 = vmatpush1.msra.mxu0 0.0
        %455 = vmatprep.subr.mxu0 0.0
        %456 = vmatpush1.msra.mxu0 0.0
        %457 = vmatprep.subr.mxu0 0.0
        %458 = vmatpush1.msra.mxu0 0.0
        %459 = vmatprep.subr.mxu0 0.0
        %460 = vmatpush1.msra.mxu0 0.0
        %461 = vmatprep.subr.mxu0 0.0
        %462 = vmatpush1.msra.mxu0 0.0
        %463 = vmatprep.subr.mxu0 %v423
        %464 = vmatpush1.msra.mxu0 %v426
        %465 = vmatprep.subr.mxu0 0.0
        %466 = vmatpush2.msra.mxu0 0.0
        %467 = vmatprep.subr.mxu0 0.0
        %468 = vmatpush2.msra.mxu0 0.0
        %469 = vmatprep.subr.mxu0 0.0
        %470 = vmatpush2.msra.mxu0 0.0
        %471 = vmatprep.subr.mxu0 0.0
        %472 = vmatpush2.msra.mxu0 0.0
        %473 = vmatprep.subr.mxu0 0.0
        %474 = vmatpush2.msra.mxu0 0.0
        %475 = vmatprep.subr.mxu0 0.0
        %476 = vmatpush2.msra.mxu0 0.0
        %477 = vmatprep.subr.mxu0 0.0
        %478 = vmatpush2.msra.mxu0 0.0
        %479 = vmatprep.subr.mxu0 0.0
        %480 = vmatpush2.msra.mxu0 0.0
        %481 = vmatprep.subr.mxu0 0.0
        %482 = vmatpush2.msra.mxu0 0.0
        %483 = vmatprep.subr.mxu0 0.0
        %484 = vmatpush2.msra.mxu0 0.0
        %485 = vmatprep.subr.mxu0 0.0
        %486 = vmatpush2.msra.mxu0 0.0
        %487 = vmatprep.subr.mxu0 0.0
        %488 = vmatpush2.msra.mxu0 0.0
        %489 = vmatprep.subr.mxu0 0.0
        %490 = vmatpush2.msra.mxu0 0.0
        %491 = vmatprep.subr.mxu0 0.0
        %492 = vmatpush2.msra.mxu0 0.0
        %493 = vmatprep.subr.mxu0 0.0
        %494 = vmatpush2.msra.mxu0 0.0
        %495 = vmatprep.subr.mxu0 0.0
        %496 = vmatpush2.msra.mxu0 0.0
        %497 = vmatprep.mubr.f32.mxu0 0.0
        %498 = vmatmul.mubr.f32.gmra.mxu0 %v431
        %v499 = vpop.f32.mrf.mxu0
        %v500 = vadd.f32 0.0, %v499
        %v501 = vpop.f32.mrf.mxu0
        %v502 = vadd.f32 0.0, %v501
        %503 = vdwg.mxu0
        %v505 = vsel %vm429, %v415, 0
        %507 = vmatprep.subr.mxu0 0.0
        %508 = vmatpush1.msra.mxu0 0.0
        %509 = vmatprep.subr.mxu0 0.0
        %510 = vmatpush1.msra.mxu0 0.0
        %511 = vmatprep.subr.mxu0 0.0
        %512 = vmatpush1.msra.mxu0 0.0
        %513 = vmatprep.subr.mxu0 0.0
        %514 = vmatpush1.msra.mxu0 0.0
        %515 = vmatprep.subr.mxu0 0.0
        %516 = vmatpush1.msra.mxu0 0.0
        %517 = vmatprep.subr.mxu0 0.0
        %518 = vmatpush1.msra.mxu0 0.0
        %519 = vmatprep.subr.mxu0 0.0
        %520 = vmatpush1.msra.mxu0 0.0
        %521 = vmatprep.subr.mxu0 0.0
        %522 = vmatpush1.msra.mxu0 0.0
        %523 = vmatprep.subr.mxu0 0.0
        %524 = vmatpush1.msra.mxu0 0.0
        %525 = vmatprep.subr.mxu0 0.0
        %526 = vmatpush1.msra.mxu0 0.0
        %527 = vmatprep.subr.mxu0 0.0
        %528 = vmatpush1.msra.mxu0 0.0
        %529 = vmatprep.subr.mxu0 0.0
        %530 = vmatpush1.msra.mxu0 0.0
        %531 = vmatprep.subr.mxu0 0.0
        %532 = vmatpush1.msra.mxu0 0.0
        %533 = vmatprep.subr.mxu0 0.0
        %534 = vmatpush1.msra.mxu0 0.0
        %535 = vmatprep.subr.mxu0 0.0
        %536 = vmatpush1.msra.mxu0 0.0
        %537 = vmatprep.subr.mxu0 %v411
        %538 = vmatpush1.msra.mxu0 %v414
        %539 = vmatprep.subr.mxu0 0.0
        %540 = vmatpush2.msra.mxu0 0.0
        %541 = vmatprep.subr.mxu0 0.0
        %542 = vmatpush2.msra.mxu0 0.0
        %543 = vmatprep.subr.mxu0 0.0
        %544 = vmatpush2.msra.mxu0 0.0
        %545 = vmatprep.subr.mxu0 0.0
        %546 = vmatpush2.msra.mxu0 0.0
        %547 = vmatprep.subr.mxu0 0.0
        %548 = vmatpush2.msra.mxu0 0.0
        %549 = vmatprep.subr.mxu0 0.0
        %550 = vmatpush2.msra.mxu0 0.0
        %551 = vmatprep.subr.mxu0 0.0
        %552 = vmatpush2.msra.mxu0 0.0
        %553 = vmatprep.subr.mxu0 0.0
        %554 = vmatpush2.msra.mxu0 0.0
        %555 = vmatprep.subr.mxu0 0.0
        %556 = vmatpush2.msra.mxu0 0.0
        %557 = vmatprep.subr.mxu0 0.0
        %558 = vmatpush2.msra.mxu0 0.0
        %559 = vmatprep.subr.mxu0 0.0
        %560 = vmatpush2.msra.mxu0 0.0
        %561 = vmatprep.subr.mxu0 0.0
        %562 = vmatpush2.msra.mxu0 0.0
        %563 = vmatprep.subr.mxu0 0.0
        %564 = vmatpush2.msra.mxu0 0.0
        %565 = vmatprep.subr.mxu0 0.0
        %566 = vmatpush2.msra.mxu0 0.0
        %567 = vmatprep.subr.mxu0 0.0
        %568 = vmatpush2.msra.mxu0 0.0
        %569 = vmatprep.subr.mxu0 0.0
        %570 = vmatpush2.msra.mxu0 0.0
        %571 = vmatprep.mubr.f32.mxu0 0.0
        %572 = vmatmul.mubr.f32.gmra.mxu0 %v505
        %v573 = vpop.f32.mrf.mxu0
        %v574 = vadd.f32 %v500, %v573
        %v575 = vpop.f32.mrf.mxu0
        %v576 = vadd.f32 %v502, %v575
        %577 = vdwg.mxu0
        %580 = vrot.lane.b32.xlu0 %v402, 15
        %v581 = vpop.permute.xlu0 %580
        %582 = vrot.lane.b32.xlu0 %v403, 15
        %v583 = vpop.permute.xlu0 %582
        %vm584 = vcmask 121856
        %v585 = vsel %vm584, %v581, %v583
        %v588 = vsel %vm584, 0.0, %v581
        %s589 = scalar_lea.vmem %s3, 16
        %v590 = vld [vmem:[%s589] sm:$0xff]
        %v592 = vsel %vm429, %v590, 0
        %594 = vmatprep.subr.mxu0 0.0
        %595 = vmatpush1.msra.mxu0 0.0
        %596 = vmatprep.subr.mxu0 0.0
        %597 = vmatpush1.msra.mxu0 0.0
        %598 = vmatprep.subr.mxu0 0.0
        %599 = vmatpush1.msra.mxu0 0.0
        %600 = vmatprep.subr.mxu0 0.0
        %601 = vmatpush1.msra.mxu0 0.0
        %602 = vmatprep.subr.mxu0 0.0
        %603 = vmatpush1.msra.mxu0 0.0
        %604 = vmatprep.subr.mxu0 0.0
        %605 = vmatpush1.msra.mxu0 0.0
        %606 = vmatprep.subr.mxu0 0.0
        %607 = vmatpush1.msra.mxu0 0.0
        %608 = vmatprep.subr.mxu0 0.0
        %609 = vmatpush1.msra.mxu0 0.0
        %610 = vmatprep.subr.mxu0 0.0
        %611 = vmatpush1.msra.mxu0 0.0
        %612 = vmatprep.subr.mxu0 0.0
        %613 = vmatpush1.msra.mxu0 0.0
        %614 = vmatprep.subr.mxu0 0.0
        %615 = vmatpush1.msra.mxu0 0.0
        %616 = vmatprep.subr.mxu0 0.0
        %617 = vmatpush1.msra.mxu0 0.0
        %618 = vmatprep.subr.mxu0 0.0
        %619 = vmatpush1.msra.mxu0 0.0
        %620 = vmatprep.subr.mxu0 0.0
        %621 = vmatpush1.msra.mxu0 0.0
        %622 = vmatprep.subr.mxu0 0.0
        %623 = vmatpush1.msra.mxu0 0.0
        %624 = vmatprep.subr.mxu0 %v585
        %625 = vmatpush1.msra.mxu0 %v588
        %626 = vmatprep.subr.mxu0 0.0
        %627 = vmatpush2.msra.mxu0 0.0
        %628 = vmatprep.subr.mxu0 0.0
        %629 = vmatpush2.msra.mxu0 0.0
        %630 = vmatprep.subr.mxu0 0.0
        %631 = vmatpush2.msra.mxu0 0.0
        %632 = vmatprep.subr.mxu0 0.0
        %633 = vmatpush2.msra.mxu0 0.0
        %634 = vmatprep.subr.mxu0 0.0
        %635 = vmatpush2.msra.mxu0 0.0
        %636 = vmatprep.subr.mxu0 0.0
        %637 = vmatpush2.msra.mxu0 0.0
        %638 = vmatprep.subr.mxu0 0.0
        %639 = vmatpush2.msra.mxu0 0.0
        %640 = vmatprep.subr.mxu0 0.0
        %641 = vmatpush2.msra.mxu0 0.0
        %642 = vmatprep.subr.mxu0 0.0
        %643 = vmatpush2.msra.mxu0 0.0
        %644 = vmatprep.subr.mxu0 0.0
        %645 = vmatpush2.msra.mxu0 0.0
        %646 = vmatprep.subr.mxu0 0.0
        %647 = vmatpush2.msra.mxu0 0.0
        %648 = vmatprep.subr.mxu0 0.0
        %649 = vmatpush2.msra.mxu0 0.0
        %650 = vmatprep.subr.mxu0 0.0
        %651 = vmatpush2.msra.mxu0 0.0
        %652 = vmatprep.subr.mxu0 0.0
        %653 = vmatpush2.msra.mxu0 0.0
        %654 = vmatprep.subr.mxu0 0.0
        %655 = vmatpush2.msra.mxu0 0.0
        %656 = vmatprep.subr.mxu0 0.0
        %657 = vmatpush2.msra.mxu0 0.0
        %658 = vmatprep.mubr.f32.mxu0 0.0
        %659 = vmatmul.mubr.f32.gmra.mxu0 %v592
        %v660 = vpop.f32.mrf.mxu0
        %v661 = vadd.f32 0.0, %v660
        %v662 = vpop.f32.mrf.mxu0
        %v663 = vadd.f32 0.0, %v662
        %664 = vdwg.mxu0
        %v665 = vadd.f32 %v574, %v661
        %v666 = vadd.f32 %v576, %v663
        %667 = vrot.lane.b32.xlu0 %v398, 1
        %v668 = vpop.permute.xlu0 %667
        %669 = vrot.lane.b32.xlu0 %v399, 1
        %v670 = vpop.permute.xlu0 %669
        %vm671 = vcmask 7168
        %v672 = vsel %vm671, %v668, %v670
        %v675 = vsel %vm671, 0.0, %v668
        %s676 = scalar_lea.vmem %s3, 24
        %v677 = vld [vmem:[%s676] sm:$0xff]
        %v679 = vsel %vm429, %v677, 0
        %681 = vmatprep.subr.mxu0 0.0
        %682 = vmatpush1.msra.mxu0 0.0
        %683 = vmatprep.subr.mxu0 0.0
        %684 = vmatpush1.msra.mxu0 0.0
        %685 = vmatprep.subr.mxu0 0.0
        %686 = vmatpush1.msra.mxu0 0.0
        %687 = vmatprep.subr.mxu0 0.0
        %688 = vmatpush1.msra.mxu0 0.0
        %689 = vmatprep.subr.mxu0 0.0
        %690 = vmatpush1.msra.mxu0 0.0
        %691 = vmatprep.subr.mxu0 0.0
        %692 = vmatpush1.msra.mxu0 0.0
        %693 = vmatprep.subr.mxu0 0.0
        %694 = vmatpush1.msra.mxu0 0.0
        %695 = vmatprep.subr.mxu0 0.0
        %696 = vmatpush1.msra.mxu0 0.0
        %697 = vmatprep.subr.mxu0 0.0
        %698 = vmatpush1.msra.mxu0 0.0
        %699 = vmatprep.subr.mxu0 0.0
        %700 = vmatpush1.msra.mxu0 0.0
        %701 = vmatprep.subr.mxu0 0.0
        %702 = vmatpush1.msra.mxu0 0.0
        %703 = vmatprep.subr.mxu0 0.0
        %704 = vmatpush1.msra.mxu0 0.0
        %705 = vmatprep.subr.mxu0 0.0
        %706 = vmatpush1.msra.mxu0 0.0
        %707 = vmatprep.subr.mxu0 0.0
        %708 = vmatpush1.msra.mxu0 0.0
        %709 = vmatprep.subr.mxu0 0.0
        %710 = vmatpush1.msra.mxu0 0.0
        %711 = vmatprep.subr.mxu0 %v672
        %712 = vmatpush1.msra.mxu0 %v675
        %713 = vmatprep.subr.mxu0 0.0
        %714 = vmatpush2.msra.mxu0 0.0
        %715 = vmatprep.subr.mxu0 0.0
        %716 = vmatpush2.msra.mxu0 0.0
        %717 = vmatprep.subr.mxu0 0.0
        %718 = vmatpush2.msra.mxu0 0.0
        %719 = vmatprep.subr.mxu0 0.0
        %720 = vmatpush2.msra.mxu0 0.0
        %721 = vmatprep.subr.mxu0 0.0
        %722 = vmatpush2.msra.mxu0 0.0
        %723 = vmatprep.subr.mxu0 0.0
        %724 = vmatpush2.msra.mxu0 0.0
        %725 = vmatprep.subr.mxu0 0.0
        %726 = vmatpush2.msra.mxu0 0.0
        %727 = vmatprep.subr.mxu0 0.0
        %728 = vmatpush2.msra.mxu0 0.0
        %729 = vmatprep.subr.mxu0 0.0
        %730 = vmatpush2.msra.mxu0 0.0
        %731 = vmatprep.subr.mxu0 0.0
        %732 = vmatpush2.msra.mxu0 0.0
        %733 = vmatprep.subr.mxu0 0.0
        %734 = vmatpush2.msra.mxu0 0.0
        %735 = vmatprep.subr.mxu0 0.0
        %736 = vmatpush2.msra.mxu0 0.0
        %737 = vmatprep.subr.mxu0 0.0
        %738 = vmatpush2.msra.mxu0 0.0
        %739 = vmatprep.subr.mxu0 0.0
        %740 = vmatpush2.msra.mxu0 0.0
        %741 = vmatprep.subr.mxu0 0.0
        %742 = vmatpush2.msra.mxu0 0.0
        %743 = vmatprep.subr.mxu0 0.0
        %744 = vmatpush2.msra.mxu0 0.0
        %745 = vmatprep.mubr.f32.mxu0 0.0
        %746 = vmatmul.mubr.f32.gmra.mxu0 %v679
        %v747 = vpop.f32.mrf.mxu0
        %v748 = vadd.f32 0.0, %v747
        %v749 = vpop.f32.mrf.mxu0
        %v750 = vadd.f32 0.0, %v749
        %751 = vdwg.mxu0
        %v752 = vadd.f32 %v665, %v748
        %v753 = vadd.f32 %v666, %v750
        %s754 = scalar_lea.vmem %s3, 32
        %v755 = vld [vmem:[%s754] sm:$0xff]
        %v757 = vsel %vm429, %v755, 0
        %759 = vmatprep.subr.mxu0 0.0
        %760 = vmatpush1.msra.mxu0 0.0
        %761 = vmatprep.subr.mxu0 0.0
        %762 = vmatpush1.msra.mxu0 0.0
        %763 = vmatprep.subr.mxu0 0.0
        %764 = vmatpush1.msra.mxu0 0.0
        %765 = vmatprep.subr.mxu0 0.0
        %766 = vmatpush1.msra.mxu0 0.0
        %767 = vmatprep.subr.mxu0 0.0
        %768 = vmatpush1.msra.mxu0 0.0
        %769 = vmatprep.subr.mxu0 0.0
        %770 = vmatpush1.msra.mxu0 0.0
        %771 = vmatprep.subr.mxu0 0.0
        %772 = vmatpush1.msra.mxu0 0.0
        %773 = vmatprep.subr.mxu0 0.0
        %774 = vmatpush1.msra.mxu0 0.0
        %775 = vmatprep.subr.mxu0 0.0
        %776 = vmatpush1.msra.mxu0 0.0
        %777 = vmatprep.subr.mxu0 0.0
        %778 = vmatpush1.msra.mxu0 0.0
        %779 = vmatprep.subr.mxu0 0.0
        %780 = vmatpush1.msra.mxu0 0.0
        %781 = vmatprep.subr.mxu0 0.0
        %782 = vmatpush1.msra.mxu0 0.0
        %783 = vmatprep.subr.mxu0 0.0
        %784 = vmatpush1.msra.mxu0 0.0
        %785 = vmatprep.subr.mxu0 0.0
        %786 = vmatpush1.msra.mxu0 0.0
        %787 = vmatprep.subr.mxu0 0.0
        %788 = vmatpush1.msra.mxu0 0.0
        %789 = vmatprep.subr.mxu0 %v368
        %790 = vmatpush1.msra.mxu0 %v367
        %791 = vmatprep.subr.mxu0 0.0
        %792 = vmatpush2.msra.mxu0 0.0
        %793 = vmatprep.subr.mxu0 0.0
        %794 = vmatpush2.msra.mxu0 0.0
        %795 = vmatprep.subr.mxu0 0.0
        %796 = vmatpush2.msra.mxu0 0.0
        %797 = vmatprep.subr.mxu0 0.0
        %798 = vmatpush2.msra.mxu0 0.0
        %799 = vmatprep.subr.mxu0 0.0
        %800 = vmatpush2.msra.mxu0 0.0
        %801 = vmatprep.subr.mxu0 0.0
        %802 = vmatpush2.msra.mxu0 0.0
        %803 = vmatprep.subr.mxu0 0.0
        %804 = vmatpush2.msra.mxu0 0.0
        %805 = vmatprep.subr.mxu0 0.0
        %806 = vmatpush2.msra.mxu0 0.0
        %807 = vmatprep.subr.mxu0 0.0
        %808 = vmatpush2.msra.mxu0 0.0
        %809 = vmatprep.subr.mxu0 0.0
        %810 = vmatpush2.msra.mxu0 0.0
        %811 = vmatprep.subr.mxu0 0.0
        %812 = vmatpush2.msra.mxu0 0.0
        %813 = vmatprep.subr.mxu0 0.0
        %814 = vmatpush2.msra.mxu0 0.0
        %815 = vmatprep.subr.mxu0 0.0
        %816 = vmatpush2.msra.mxu0 0.0
        %817 = vmatprep.subr.mxu0 0.0
        %818 = vmatpush2.msra.mxu0 0.0
        %819 = vmatprep.subr.mxu0 0.0
        %820 = vmatpush2.msra.mxu0 0.0
        %821 = vmatprep.subr.mxu0 0.0
        %822 = vmatpush2.msra.mxu0 0.0
        %823 = vmatprep.mubr.f32.mxu0 0.0
        %824 = vmatmul.mubr.f32.gmra.mxu0 %v757
        %v825 = vpop.f32.mrf.mxu0
        %v826 = vadd.f32 0.0, %v825
        %v827 = vpop.f32.mrf.mxu0
        %v828 = vadd.f32 0.0, %v827
        %829 = vdwg.mxu0
        %v830 = vadd.f32 %v752, %v826
        %v831 = vadd.f32 %v753, %v828
        %832 = vrot.lane.b32.xlu0 %v402, 127
        %v833 = vpop.permute.xlu0 %832
        %834 = vrot.lane.b32.xlu0 %v403, 127
        %v835 = vpop.permute.xlu0 %834
        %vm836 = vcmask 1039360
        %v837 = vsel %vm836, %v833, %v835
        %v840 = vsel %vm836, %v835, 0.0
        %s841 = scalar_lea.vmem %s3, 40
        %v842 = vld [vmem:[%s841] sm:$0xff]
        %v844 = vsel %vm429, %v842, 0
        %846 = vmatprep.subr.mxu0 0.0
        %847 = vmatpush1.msra.mxu0 0.0
        %848 = vmatprep.subr.mxu0 0.0
        %849 = vmatpush1.msra.mxu0 0.0
        %850 = vmatprep.subr.mxu0 0.0
        %851 = vmatpush1.msra.mxu0 0.0
        %852 = vmatprep.subr.mxu0 0.0
        %853 = vmatpush1.msra.mxu0 0.0
        %854 = vmatprep.subr.mxu0 0.0
        %855 = vmatpush1.msra.mxu0 0.0
        %856 = vmatprep.subr.mxu0 0.0
        %857 = vmatpush1.msra.mxu0 0.0
        %858 = vmatprep.subr.mxu0 0.0
        %859 = vmatpush1.msra.mxu0 0.0
        %860 = vmatprep.subr.mxu0 0.0
        %861 = vmatpush1.msra.mxu0 0.0
        %862 = vmatprep.subr.mxu0 0.0
        %863 = vmatpush1.msra.mxu0 0.0
        %864 = vmatprep.subr.mxu0 0.0
        %865 = vmatpush1.msra.mxu0 0.0
        %866 = vmatprep.subr.mxu0 0.0
        %867 = vmatpush1.msra.mxu0 0.0
        %868 = vmatprep.subr.mxu0 0.0
        %869 = vmatpush1.msra.mxu0 0.0
        %870 = vmatprep.subr.mxu0 0.0
        %871 = vmatpush1.msra.mxu0 0.0
        %872 = vmatprep.subr.mxu0 0.0
        %873 = vmatpush1.msra.mxu0 0.0
        %874 = vmatprep.subr.mxu0 0.0
        %875 = vmatpush1.msra.mxu0 0.0
        %876 = vmatprep.subr.mxu0 %v840
        %877 = vmatpush1.msra.mxu0 %v837
        %878 = vmatprep.subr.mxu0 0.0
        %879 = vmatpush2.msra.mxu0 0.0
        %880 = vmatprep.subr.mxu0 0.0
        %881 = vmatpush2.msra.mxu0 0.0
        %882 = vmatprep.subr.mxu0 0.0
        %883 = vmatpush2.msra.mxu0 0.0
        %884 = vmatprep.subr.mxu0 0.0
        %885 = vmatpush2.msra.mxu0 0.0
        %886 = vmatprep.subr.mxu0 0.0
        %887 = vmatpush2.msra.mxu0 0.0
        %888 = vmatprep.subr.mxu0 0.0
        %889 = vmatpush2.msra.mxu0 0.0
        %890 = vmatprep.subr.mxu0 0.0
        %891 = vmatpush2.msra.mxu0 0.0
        %892 = vmatprep.subr.mxu0 0.0
        %893 = vmatpush2.msra.mxu0 0.0
        %894 = vmatprep.subr.mxu0 0.0
        %895 = vmatpush2.msra.mxu0 0.0
        %896 = vmatprep.subr.mxu0 0.0
        %897 = vmatpush2.msra.mxu0 0.0
        %898 = vmatprep.subr.mxu0 0.0
        %899 = vmatpush2.msra.mxu0 0.0
        %900 = vmatprep.subr.mxu0 0.0
        %901 = vmatpush2.msra.mxu0 0.0
        %902 = vmatprep.subr.mxu0 0.0
        %903 = vmatpush2.msra.mxu0 0.0
        %904 = vmatprep.subr.mxu0 0.0
        %905 = vmatpush2.msra.mxu0 0.0
        %906 = vmatprep.subr.mxu0 0.0
        %907 = vmatpush2.msra.mxu0 0.0
        %908 = vmatprep.subr.mxu0 0.0
        %909 = vmatpush2.msra.mxu0 0.0
        %910 = vmatprep.mubr.f32.mxu0 0.0
        %911 = vmatmul.mubr.f32.gmra.mxu0 %v844
        %v912 = vpop.f32.mrf.mxu0
        %v913 = vadd.f32 0.0, %v912
        %v914 = vpop.f32.mrf.mxu0
        %v915 = vadd.f32 0.0, %v914
        %916 = vdwg.mxu0
        %v917 = vadd.f32 %v830, %v913
        %v918 = vadd.f32 %v831, %v915
        %919 = vrot.lane.b32.xlu0 %v398, 113
        %v920 = vpop.permute.xlu0 %919
        %921 = vrot.lane.b32.xlu0 %v399, 113
        %v922 = vpop.permute.xlu0 %921
        %vm923 = vcmask 924672
        %v924 = vsel %vm923, %v920, %v922
        %v927 = vsel %vm923, %v922, 0.0
        %s928 = scalar_lea.vmem %s3, 48
        %v929 = vld [vmem:[%s928] sm:$0xff]
        %v931 = vsel %vm429, %v929, 0
        %933 = vmatprep.subr.mxu0 0.0
        %934 = vmatpush1.msra.mxu0 0.0
        %935 = vmatprep.subr.mxu0 0.0
        %936 = vmatpush1.msra.mxu0 0.0
        %937 = vmatprep.subr.mxu0 0.0
        %938 = vmatpush1.msra.mxu0 0.0
        %939 = vmatprep.subr.mxu0 0.0
        %940 = vmatpush1.msra.mxu0 0.0
        %941 = vmatprep.subr.mxu0 0.0
        %942 = vmatpush1.msra.mxu0 0.0
        %943 = vmatprep.subr.mxu0 0.0
        %944 = vmatpush1.msra.mxu0 0.0
        %945 = vmatprep.subr.mxu0 0.0
        %946 = vmatpush1.msra.mxu0 0.0
        %947 = vmatprep.subr.mxu0 0.0
        %948 = vmatpush1.msra.mxu0 0.0
        %949 = vmatprep.subr.mxu0 0.0
        %950 = vmatpush1.msra.mxu0 0.0
        %951 = vmatprep.subr.mxu0 0.0
        %952 = vmatpush1.msra.mxu0 0.0
        %953 = vmatprep.subr.mxu0 0.0
        %954 = vmatpush1.msra.mxu0 0.0
        %955 = vmatprep.subr.mxu0 0.0
        %956 = vmatpush1.msra.mxu0 0.0
        %957 = vmatprep.subr.mxu0 0.0
        %958 = vmatpush1.msra.mxu0 0.0
        %959 = vmatprep.subr.mxu0 0.0
        %960 = vmatpush1.msra.mxu0 0.0
        %961 = vmatprep.subr.mxu0 0.0
        %962 = vmatpush1.msra.mxu0 0.0
        %963 = vmatprep.subr.mxu0 %v927
        %964 = vmatpush1.msra.mxu0 %v924
        %965 = vmatprep.subr.mxu0 0.0
        %966 = vmatpush2.msra.mxu0 0.0
        %967 = vmatprep.subr.mxu0 0.0
        %968 = vmatpush2.msra.mxu0 0.0
        %969 = vmatprep.subr.mxu0 0.0
        %970 = vmatpush2.msra.mxu0 0.0
        %971 = vmatprep.subr.mxu0 0.0
        %972 = vmatpush2.msra.mxu0 0.0
        %973 = vmatprep.subr.mxu0 0.0
        %974 = vmatpush2.msra.mxu0 0.0
        %975 = vmatprep.subr.mxu0 0.0
        %976 = vmatpush2.msra.mxu0 0.0
        %977 = vmatprep.subr.mxu0 0.0
        %978 = vmatpush2.msra.mxu0 0.0
        %979 = vmatprep.subr.mxu0 0.0
        %980 = vmatpush2.msra.mxu0 0.0
        %981 = vmatprep.subr.mxu0 0.0
        %982 = vmatpush2.msra.mxu0 0.0
        %983 = vmatprep.subr.mxu0 0.0
        %984 = vmatpush2.msra.mxu0 0.0
        %985 = vmatprep.subr.mxu0 0.0
        %986 = vmatpush2.msra.mxu0 0.0
        %987 = vmatprep.subr.mxu0 0.0
        %988 = vmatpush2.msra.mxu0 0.0
        %989 = vmatprep.subr.mxu0 0.0
        %990 = vmatpush2.msra.mxu0 0.0
        %991 = vmatprep.subr.mxu0 0.0
        %992 = vmatpush2.msra.mxu0 0.0
        %993 = vmatprep.subr.mxu0 0.0
        %994 = vmatpush2.msra.mxu0 0.0
        %995 = vmatprep.subr.mxu0 0.0
        %996 = vmatpush2.msra.mxu0 0.0
        %997 = vmatprep.mubr.f32.mxu0 0.0
        %998 = vmatmul.mubr.f32.gmra.mxu0 %v931
        %v999 = vpop.f32.mrf.mxu0
        %v1000 = vadd.f32 0.0, %v999
        %v1001 = vpop.f32.mrf.mxu0
        %v1002 = vadd.f32 0.0, %v1001
        %1003 = vdwg.mxu0
        %v1004 = vadd.f32 %v917, %v1000
        %v1005 = vadd.f32 %v918, %v1002
        %1006 = vrot.lane.b32.xlu0 %v367, 112
        %v1007 = vpop.permute.xlu0 %1006
        %1008 = vrot.lane.b32.xlu0 %v368, 112
        %v1009 = vpop.permute.xlu0 %1008
        %vm1010 = vcmask 916480
        %v1011 = vsel %vm1010, %v1007, %v1009
        %v1014 = vsel %vm1010, %v1009, 0.0
        %s1015 = scalar_lea.vmem %s3, 56
        %v1016 = vld [vmem:[%s1015] sm:$0xff]
        %v1018 = vsel %vm429, %v1016, 0
        %1020 = vmatprep.subr.mxu0 0.0
        %1021 = vmatpush1.msra.mxu0 0.0
        %1022 = vmatprep.subr.mxu0 0.0
        %1023 = vmatpush1.msra.mxu0 0.0
        %1024 = vmatprep.subr.mxu0 0.0
        %1025 = vmatpush1.msra.mxu0 0.0
        %1026 = vmatprep.subr.mxu0 0.0
        %1027 = vmatpush1.msra.mxu0 0.0
        %1028 = vmatprep.subr.mxu0 0.0
        %1029 = vmatpush1.msra.mxu0 0.0
        %1030 = vmatprep.subr.mxu0 0.0
        %1031 = vmatpush1.msra.mxu0 0.0
        %1032 = vmatprep.subr.mxu0 0.0
        %1033 = vmatpush1.msra.mxu0 0.0
        %1034 = vmatprep.subr.mxu0 0.0
        %1035 = vmatpush1.msra.mxu0 0.0
        %1036 = vmatprep.subr.mxu0 0.0
        %1037 = vmatpush1.msra.mxu0 0.0
        %1038 = vmatprep.subr.mxu0 0.0
        %1039 = vmatpush1.msra.mxu0 0.0
        %1040 = vmatprep.subr.mxu0 0.0
        %1041 = vmatpush1.msra.mxu0 0.0
        %1042 = vmatprep.subr.mxu0 0.0
        %1043 = vmatpush1.msra.mxu0 0.0
        %1044 = vmatprep.subr.mxu0 0.0
        %1045 = vmatpush1.msra.mxu0 0.0
        %1046 = vmatprep.subr.mxu0 0.0
        %1047 = vmatpush1.msra.mxu0 0.0
        %1048 = vmatprep.subr.mxu0 0.0
        %1049 = vmatpush1.msra.mxu0 0.0
        %1050 = vmatprep.subr.mxu0 %v1014
        %1051 = vmatpush1.msra.mxu0 %v1011
        %1052 = vmatprep.subr.mxu0 0.0
        %1053 = vmatpush2.msra.mxu0 0.0
        %1054 = vmatprep.subr.mxu0 0.0
        %1055 = vmatpush2.msra.mxu0 0.0
        %1056 = vmatprep.subr.mxu0 0.0
        %1057 = vmatpush2.msra.mxu0 0.0
        %1058 = vmatprep.subr.mxu0 0.0
        %1059 = vmatpush2.msra.mxu0 0.0
        %1060 = vmatprep.subr.mxu0 0.0
        %1061 = vmatpush2.msra.mxu0 0.0
        %1062 = vmatprep.subr.mxu0 0.0
        %1063 = vmatpush2.msra.mxu0 0.0
        %1064 = vmatprep.subr.mxu0 0.0
        %1065 = vmatpush2.msra.mxu0 0.0
        %1066 = vmatprep.subr.mxu0 0.0
        %1067 = vmatpush2.msra.mxu0 0.0
        %1068 = vmatprep.subr.mxu0 0.0
        %1069 = vmatpush2.msra.mxu0 0.0
        %1070 = vmatprep.subr.mxu0 0.0
        %1071 = vmatpush2.msra.mxu0 0.0
        %1072 = vmatprep.subr.mxu0 0.0
        %1073 = vmatpush2.msra.mxu0 0.0
        %1074 = vmatprep.subr.mxu0 0.0
        %1075 = vmatpush2.msra.mxu0 0.0
        %1076 = vmatprep.subr.mxu0 0.0
        %1077 = vmatpush2.msra.mxu0 0.0
        %1078 = vmatprep.subr.mxu0 0.0
        %1079 = vmatpush2.msra.mxu0 0.0
        %1080 = vmatprep.subr.mxu0 0.0
        %1081 = vmatpush2.msra.mxu0 0.0
        %1082 = vmatprep.subr.mxu0 0.0
        %1083 = vmatpush2.msra.mxu0 0.0
        %1084 = vmatprep.mubr.f32.mxu0 0.0
        %1085 = vmatmul.mubr.f32.gmra.mxu0 %v1018
        %v1086 = vpop.f32.mrf.mxu0
        %v1087 = vadd.f32 0.0, %v1086
        %v1088 = vpop.f32.mrf.mxu0
        %v1089 = vadd.f32 0.0, %v1088
        %1090 = vdwg.mxu0
        %v1091 = vadd.f32 %v1004, %v1087
        %v1092 = vadd.f32 %v1005, %v1089
        %1093 = vrot.lane.b32.xlu0 %v402, 111
        %v1094 = vpop.permute.xlu0 %1093
        %1095 = vrot.lane.b32.xlu0 %v403, 111
        %v1096 = vpop.permute.xlu0 %1095
        %vm1097 = vcmask 908288
        %v1098 = vsel %vm1097, %v1094, %v1096
        %v1101 = vsel %vm1097, %v1096, 0.0
        %s1102 = scalar_lea.vmem %s3, 64
        %v1103 = vld [vmem:[%s1102] sm:$0xff]
        %v1105 = vsel %vm429, %v1103, 0
        %1107 = vmatprep.subr.mxu0 0.0
        %1108 = vmatpush1.msra.mxu0 0.0
        %1109 = vmatprep.subr.mxu0 0.0
        %1110 = vmatpush1.msra.mxu0 0.0
        %1111 = vmatprep.subr.mxu0 0.0
        %1112 = vmatpush1.msra.mxu0 0.0
        %1113 = vmatprep.subr.mxu0 0.0
        %1114 = vmatpush1.msra.mxu0 0.0
        %1115 = vmatprep.subr.mxu0 0.0
        %1116 = vmatpush1.msra.mxu0 0.0
        %1117 = vmatprep.subr.mxu0 0.0
        %1118 = vmatpush1.msra.mxu0 0.0
        %1119 = vmatprep.subr.mxu0 0.0
        %1120 = vmatpush1.msra.mxu0 0.0
        %1121 = vmatprep.subr.mxu0 0.0
        %1122 = vmatpush1.msra.mxu0 0.0
        %1123 = vmatprep.subr.mxu0 0.0
        %1124 = vmatpush1.msra.mxu0 0.0
        %1125 = vmatprep.subr.mxu0 0.0
        %1126 = vmatpush1.msra.mxu0 0.0
        %1127 = vmatprep.subr.mxu0 0.0
        %1128 = vmatpush1.msra.mxu0 0.0
        %1129 = vmatprep.subr.mxu0 0.0
        %1130 = vmatpush1.msra.mxu0 0.0
        %1131 = vmatprep.subr.mxu0 0.0
        %1132 = vmatpush1.msra.mxu0 0.0
        %1133 = vmatprep.subr.mxu0 0.0
        %1134 = vmatpush1.msra.mxu0 0.0
        %1135 = vmatprep.subr.mxu0 0.0
        %1136 = vmatpush1.msra.mxu0 0.0
        %1137 = vmatprep.subr.mxu0 %v1101
        %1138 = vmatpush1.msra.mxu0 %v1098
        %1139 = vmatprep.subr.mxu0 0.0
        %1140 = vmatpush2.msra.mxu0 0.0
        %1141 = vmatprep.subr.mxu0 0.0
        %1142 = vmatpush2.msra.mxu0 0.0
        %1143 = vmatprep.subr.mxu0 0.0
        %1144 = vmatpush2.msra.mxu0 0.0
        %1145 = vmatprep.subr.mxu0 0.0
        %1146 = vmatpush2.msra.mxu0 0.0
        %1147 = vmatprep.subr.mxu0 0.0
        %1148 = vmatpush2.msra.mxu0 0.0
        %1149 = vmatprep.subr.mxu0 0.0
        %1150 = vmatpush2.msra.mxu0 0.0
        %1151 = vmatprep.subr.mxu0 0.0
        %1152 = vmatpush2.msra.mxu0 0.0
        %1153 = vmatprep.subr.mxu0 0.0
        %1154 = vmatpush2.msra.mxu0 0.0
        %1155 = vmatprep.subr.mxu0 0.0
        %1156 = vmatpush2.msra.mxu0 0.0
        %1157 = vmatprep.subr.mxu0 0.0
        %1158 = vmatpush2.msra.mxu0 0.0
        %1159 = vmatprep.subr.mxu0 0.0
        %1160 = vmatpush2.msra.mxu0 0.0
        %1161 = vmatprep.subr.mxu0 0.0
        %1162 = vmatpush2.msra.mxu0 0.0
        %1163 = vmatprep.subr.mxu0 0.0
        %1164 = vmatpush2.msra.mxu0 0.0
        %1165 = vmatprep.subr.mxu0 0.0
        %1166 = vmatpush2.msra.mxu0 0.0
        %1167 = vmatprep.subr.mxu0 0.0
        %1168 = vmatpush2.msra.mxu0 0.0
        %1169 = vmatprep.subr.mxu0 0.0
        %1170 = vmatpush2.msra.mxu0 0.0
        %1171 = vmatprep.mubr.f32.mxu0 0.0
        %1172 = vmatmul.mubr.f32.gmra.mxu0 %v1105
        %v1173 = vpop.f32.mrf.mxu0
        %v1174 = vadd.f32 0.0, %v1173
        %v1175 = vpop.f32.mrf.mxu0
        %v1176 = vadd.f32 0.0, %v1175
        %1177 = vdwg.mxu0
        %v1178 = vadd.f32 %v1091, %v1174
        %v1179 = vadd.f32 %v1092, %v1176
        %v1180 = vld [vmem:[%s4] sm:$0xff]
        %1182 = vset.pattern.permute.xlu0 0
        %1183 = vperm.xlu0 %1182, %v1180
        %v1184 = vpop.permute.xlu0 %1183
        %v1186 = vadd.f32 %v1178, %v1184
        %v1187 = vadd.f32 %v1179, %v1184
        %v1188 = vmax.f32 %v1186, 0.0
        %v1189 = vmax.f32 %v1187, 0.0
        %v1190 = vld [vmem:[%s5] sm:$0xf]
        %v1191 = vld [vmem:[%s6] sm:$0xf]
        %1193 = vset.pattern.permute.xlu0 0
        %1194 = vperm.xlu0 %1193, %v1191
        %v1195 = vpop.permute.xlu0 %1194
        %v1198 = vsel %vm429, %v1190, 0
        %1200 = vmatprep.subr.mxu0 0.0
        %1201 = vmatpush1.msra.mxu0 0.0
        %1202 = vmatprep.subr.mxu0 0.0
        %1203 = vmatpush1.msra.mxu0 0.0
        %1204 = vmatprep.subr.mxu0 0.0
        %1205 = vmatpush1.msra.mxu0 0.0
        %1206 = vmatprep.subr.mxu0 0.0
        %1207 = vmatpush1.msra.mxu0 0.0
        %1208 = vmatprep.subr.mxu0 0.0
        %1209 = vmatpush1.msra.mxu0 0.0
        %1210 = vmatprep.subr.mxu0 0.0
        %1211 = vmatpush1.msra.mxu0 0.0
        %1212 = vmatprep.subr.mxu0 0.0
        %1213 = vmatpush1.msra.mxu0 0.0
        %1214 = vmatprep.subr.mxu0 0.0
        %1215 = vmatpush1.msra.mxu0 0.0
        %1216 = vmatprep.subr.mxu0 0.0
        %1217 = vmatpush1.msra.mxu0 0.0
        %1218 = vmatprep.subr.mxu0 0.0
        %1219 = vmatpush1.msra.mxu0 0.0
        %1220 = vmatprep.subr.mxu0 0.0
        %1221 = vmatpush1.msra.mxu0 0.0
        %1222 = vmatprep.subr.mxu0 0.0
        %1223 = vmatpush1.msra.mxu0 0.0
        %1224 = vmatprep.subr.mxu0 0.0
        %1225 = vmatpush1.msra.mxu0 0.0
        %1226 = vmatprep.subr.mxu0 0.0
        %1227 = vmatpush1.msra.mxu0 0.0
        %1228 = vmatprep.subr.mxu0 0.0
        %1229 = vmatpush1.msra.mxu0 0.0
        %1230 = vmatprep.subr.mxu0 %v1189
        %1231 = vmatpush1.msra.mxu0 %v1188
        %1232 = vmatprep.subr.mxu0 0.0
        %1233 = vmatpush2.msra.mxu0 0.0
        %1234 = vmatprep.subr.mxu0 0.0
        %1235 = vmatpush2.msra.mxu0 0.0
        %1236 = vmatprep.subr.mxu0 0.0
        %1237 = vmatpush2.msra.mxu0 0.0
        %1238 = vmatprep.subr.mxu0 0.0
        %1239 = vmatpush2.msra.mxu0 0.0
        %1240 = vmatprep.subr.mxu0 0.0
        %1241 = vmatpush2.msra.mxu0 0.0
        %1242 = vmatprep.subr.mxu0 0.0
        %1243 = vmatpush2.msra.mxu0 0.0
        %1244 = vmatprep.subr.mxu0 0.0
        %1245 = vmatpush2.msra.mxu0 0.0
        %1246 = vmatprep.subr.mxu0 0.0
        %1247 = vmatpush2.msra.mxu0 0.0
        %1248 = vmatprep.subr.mxu0 0.0
        %1249 = vmatpush2.msra.mxu0 0.0
        %1250 = vmatprep.subr.mxu0 0.0
        %1251 = vmatpush2.msra.mxu0 0.0
        %1252 = vmatprep.subr.mxu0 0.0
        %1253 = vmatpush2.msra.mxu0 0.0
        %1254 = vmatprep.subr.mxu0 0.0
        %1255 = vmatpush2.msra.mxu0 0.0
        %1256 = vmatprep.subr.mxu0 0.0
        %1257 = vmatpush2.msra.mxu0 0.0
        %1258 = vmatprep.subr.mxu0 0.0
        %1259 = vmatpush2.msra.mxu0 0.0
        %1260 = vmatprep.subr.mxu0 0.0
        %1261 = vmatpush2.msra.mxu0 0.0
        %1262 = vmatprep.subr.mxu0 0.0
        %1263 = vmatpush2.msra.mxu0 0.0
        %1264 = vmatprep.mubr.f32.mxu0 0.0
        %1265 = vmatmul.mubr.f32.gmra.mxu0 %v1198
        %v1266 = vpop.f32.mrf.mxu0
        %v1267 = vadd.f32 %v1195, %v1266
        %v1268 = vpop.f32.mrf.mxu0
        %v1269 = vadd.f32 %v1195, %v1268
        %1270 = vdwg.mxu0
        %v1272 = vadd.f32 %v1267, %v277
        %v1273 = vadd.f32 %v1269, %v286
        %v1274 = vmax.f32 %v1272, 0.0
        %v1275 = vmax.f32 %v1273, 0.0
        %v1278 = vcombine.low %v1274, %v1275
        %1280 = vst [vmem:[%s271] sm:$0xff] %v1278
        %s1281 = sand.u32 %s181, 1
        %s1282 = scalar_lea.sflag [#allocation3], %s1281
        %s1283 = sand.u32 %s181, 1
        %s1284 = smul.addr %s1283, 8
        %s1285 = scalar_lea.vmem [#allocation2], %s1284
        // Predicated region
        $region49: #{tpu_custom_call.1} parent=47 // pred_check
          %p1286 = pneg %p191
        $region50: #{tpu_custom_call.1} parent=47 // pred_check_branch
          %1288 = sbr.rel (%p1286) target = $region52
        $region51: #{tpu_custom_call.1} parent=47 // pred_region
          %s1290 = ssub.s32 128, 128
          %1291 = vsyncadd %s1282, %s1290
          %s1292 = smul.addr %s21, 2
          %s1293 = smul.addr %s1292, 64
          %s1294 = scalar_lea.hbm %s7, %s1293
          %s1296 = sshll.u32 %s1285, 4
          %s1297 = int_to_ptr.vmem [resolvable:$true] %s1296
          %1299 = dma.vmem_to_hbm [thread:$0]  %s1297, 128, %s1294, %s1282
        $region52: #{tpu_custom_call.1} parent=47 // pred_fallthru
          _
      $region48: #{tpu_custom_call.1} parent=5 // pred_fallthru
        _
      %p1300 = scmp.le.s32.totalorder 2, %s16
      // Predicated region
      $region53: #{tpu_custom_call.1} parent=5 // pred_check
        %p1301 = pneg %p1300
      $region54: #{tpu_custom_call.1} parent=5 // pred_check_branch
        %1303 = sbr.rel (%p1301) target = $region56
      $region55: #{tpu_custom_call.1} parent=5 // pred_region
        %s1304 = ssub.s32 %s16, 2
        // Predicated region
        $region57: #{tpu_custom_call.1} parent=55 // pred_check
          %p1305 = pneg %p197
        $region58: #{tpu_custom_call.1} parent=55 // pred_check_branch
          %1307 = sbr.rel (%p1305) target = $region60
        $region59: #{tpu_custom_call.1} parent=55 // pred_region
          %s1308 = sand.u32 %s182, 1
          %s1309 = scalar_lea.sflag [#allocation3], %s1308
          %s1310 = sand.u32 %s182, 1
          %s1311 = smul.addr %s1310, 8
          %s1312 = scalar_lea.vmem [#allocation2], %s1311
          %1313 = dma.done %s1309, 128
        $region60: #{tpu_custom_call.1} parent=55 // pred_fallthru
          _
      $region56: #{tpu_custom_call.1} parent=5 // pred_fallthru
        _
    $region6: #{tpu_custom_call.1} parent=1 // loop_footer
      %s20 = sadd.s32 1, %s16
    $region7: #{tpu_custom_call.1} parent=1 // loop_footer_branch
      %15 = sbr.rel target = $region3
    $region8: #{tpu_custom_call.1} parent=1 // loop_exit
      _
    %1314 = vsyncpa [#allocation3], 1
    %s1315 = scalar_lea.sflag [#allocation3], 1
    %1316 = vsyncpa %s1315, 1

</llo_original>
